<compile_context>
chip_gen: v7x
topology: tpu7x:2x2x1
jax: 0.10.0
libtpu: 0.0.40
codegen_flags: <defaults>
</compile_context>

<pallas_src>
import math
import numpy as np
import jax
import jax.numpy as jnp
from jax.experimental import pallas as pl
from jax.experimental.pallas import tpu as pltpu


# -----------------------------------------------------------------------------
# CheapTrick constant tables (deterministic, matches the PyTorch __init__ math)
# -----------------------------------------------------------------------------
def build_window_table(sampling_rate, fft_size, f0_floor, f0_ceil):
    table = np.zeros((f0_ceil + 1, fft_size), dtype=np.float32)
    for f0 in range(f0_floor, f0_ceil + 1):
        half_win_len = round(1.5 * sampling_rate / f0)
        base_index = np.arange(-half_win_len, half_win_len + 1, dtype=np.float64)
        position = base_index / 1.5 / sampling_rate
        left = fft_size // 2 - half_win_len
        right = fft_size // 2 + half_win_len + 1
        window = np.zeros(fft_size, dtype=np.float64)
        window[left:right] = 0.5 * np.cos(math.pi * position * f0) + 0.5
        average = np.sqrt(np.sum(window * window))
        table[f0] = (window / average).astype(np.float32)
    return table


def build_lifter_tables(sampling_rate, fft_size, f0_floor, f0_ceil, q1):
    n_bins = fft_size // 2 + 1
    q0 = 1.0 - 2.0 * q1
    smooth = np.zeros((f0_ceil + 1, n_bins), dtype=np.float32)
    comp = np.zeros((f0_ceil + 1, n_bins), dtype=np.float32)
    quefrency = np.arange(1, n_bins, dtype=np.float64) / sampling_rate
    for f0 in range(f0_floor, f0_ceil + 1):
        s = np.zeros(n_bins, dtype=np.float64)
        c = np.zeros(n_bins, dtype=np.float64)
        s[0] = 1.0
        s[1:] = np.sin(math.pi * f0 * quefrency) / (math.pi * f0 * quefrency)
        c[0] = q0 + 2.0 * q1
        c[1:] = q0 + 2.0 * q1 * np.cos(2.0 * math.pi * f0 * quefrency)
        smooth[f0] = s.astype(np.float32)
        comp[f0] = c.astype(np.float32)
    return smooth, comp


def build_dft_matrices(fft_size, pb):
    """Dense DFT bases (lane-padded to pb columns) so rfft/irfft are MXU matmuls.

    Padded rows/cols are zero, so padded bins never contaminate real bins and
    padded output columns are exactly zero.
    """
    n_bins = fft_size // 2 + 1

    n = np.arange(fft_size, dtype=np.float64)[:, None]
    k = np.arange(n_bins, dtype=np.float64)[None, :]
    ang = 2.0 * np.pi * n * k / fft_size
    cos_f = np.zeros((fft_size, pb), dtype=np.float32)
    sin_f = np.zeros((fft_size, pb), dtype=np.float32)
    cos_f[:, :n_bins] = np.cos(ang)
    sin_f[:, :n_bins] = np.sin(ang)
    fused_dft = np.concatenate([cos_f, sin_f], axis=1)        # (fft, 2*pb)

    # rfft(real symmetric length-fft signal).real, folded onto the n_bins inputs:
    #   cep[k] = sum_m w_m * logp[m] * cos(2*pi*m*k/N),  w_m = 1 for m in {0, N/2}, else 2
    m = np.arange(n_bins, dtype=np.float64)[:, None]
    kk = np.arange(n_bins, dtype=np.float64)[None, :]
    wm = np.where((m == 0) | (m == fft_size // 2), 1.0, 2.0)
    cos_c = np.zeros((pb, pb), dtype=np.float32)
    cos_c[:n_bins, :n_bins] = wm * np.cos(2.0 * np.pi * m * kk / fft_size)

    # irfft of a real (zero-imaginary) half-spectrum, keeping samples [0, n_bins):
    #   out[n] = (1/N) * sum_k w_k * X[k] * cos(2*pi*k*n/N)
    k2 = np.arange(n_bins, dtype=np.float64)[:, None]
    nn = np.arange(n_bins, dtype=np.float64)[None, :]
    wk = np.where((k2 == 0) | (k2 == fft_size // 2), 1.0, 2.0)
    cos_i = np.zeros((pb, pb), dtype=np.float32)
    cos_i[:n_bins, :n_bins] = wk * np.cos(2.0 * np.pi * k2 * nn / fft_size) / fft_size
    return fused_dft, cos_c, cos_i


# -----------------------------------------------------------------------------
# Glue: F0 quantization, framing, table gathers (plain JAX)
# -----------------------------------------------------------------------------
def prepare_inputs(s, f, window_tbl, smooth_tbl, comp_tbl, *,
                   hop_size, fft_size, f0_floor, f0_ceil, uv_threshold):
    B, T = s.shape
    _, Tp = f.shape

    # Step0 of CheapTrick: V/UV decision, clamp, round to integer F0 index.
    voiced = (f > uv_threshold).astype(f.dtype)
    fq = voiced * f + (1.0 - voiced) * f0_ceil
    fq = jnp.round(jnp.clip(fq, f0_floor, f0_ceil)).astype(jnp.int32)

    # ConstantPad2d(fft//2, fft//2) + unfold(1, fft_size, hop_size)
    padded = jnp.pad(s.astype(jnp.float32), ((0, 0), (fft_size // 2, fft_size // 2)))
    idx = jnp.arange(Tp)[:, None] * hop_size + jnp.arange(fft_size)[None, :]
    frames = padded[:, idx]                                # (B, T', fft)

    windows = window_tbl[fq]                               # (B, T', fft)
    smooth = smooth_tbl[fq]                                # (B, T', pb)  (lane-padded)
    comp = comp_tbl[fq]                                    # (B, T', pb)
    return frames, windows, smooth, comp


# -----------------------------------------------------------------------------
# Pallas kernel: windowing + fused DFT power spectrum + log-cepstrum +
#                liftering + inverse DFT + per-block sum-of-squares
# -----------------------------------------------------------------------------
def _make_kernel(fb, pb):
    def kernel(frames_ref, win_ref, sm_ref, cp_ref,
               dft_ref, cosc_ref, cosi_ref, out_ref):
        @pl.when(pl.program_id(1) == 0)
        def _init():
            out_ref[...] = jnp.zeros_like(out_ref)

        xw = frames_ref[...] * win_ref[...]                              # (fb, fft)
        # Forward DFT (re & im in one matmul); keep HIGHEST here (feeds the log).
        spec = jnp.dot(xw, dft_ref[...],
                       precision=jax.lax.Precision.HIGHEST,
                       preferred_element_type=jnp.float32)               # (fb, 2*pb)
        re = spec[:, :pb]
        im = spec[:, pb:]
        power = re * re + im * im                                        # |rfft|^2
        logp = jnp.log(jnp.maximum(power, 1e-7))
        # Cepstrum / envelope matmuls: DEFAULT precision is plenty downstream of log.
        cep = jnp.dot(logp, cosc_ref[...],
                      preferred_element_type=jnp.float32)                # (fb, pb)
        lift = cep * sm_ref[...] * cp_ref[...]                           # liftering
        env = jnp.dot(lift, cosi_ref[...],
                      preferred_element_type=jnp.float32)                # envelope
        sq = env * env
        # Pure-VPU partial reduce: fold the fb rows into an (8, pb) accumulator.
        out_ref[...] += jnp.sum(sq.reshape(fb // 8, 8, pb), axis=0)
    return kernel


def _round_up(x, m):
    return ((x + m - 1) // m) * m


def source_loss(s, f, *, sampling_rate, hop_size, fft_size, f0_floor, f0_ceil,
                uv_threshold=0.0, q1=-0.15, frame_block=512, n_cores=2):
    n_bins = fft_size // 2 + 1
    pb = _round_up(n_bins, 128)                             # lane-padded bin count

    # Constant tables (lifters lane-padded with zeros -> padded bins contribute 0).
    window_tbl = jnp.asarray(build_window_table(sampling_rate, fft_size, f0_floor, f0_ceil))
    smooth_np, comp_np = build_lifter_tables(sampling_rate, fft_size, f0_floor, f0_ceil, q1)
    smooth_tbl = jnp.asarray(np.pad(smooth_np, ((0, 0), (0, pb - n_bins))))
    comp_tbl = jnp.asarray(np.pad(comp_np, ((0, 0), (0, pb - n_bins))))
    fused_dft, cos_c, cos_i = build_dft_matrices(fft_size, pb)

    frames, windows, smooth, comp = prepare_inputs(
        s, f, window_tbl, smooth_tbl, comp_tbl,
        hop_size=hop_size, fft_size=fft_size,
        f0_floor=f0_floor, f0_ceil=f0_ceil, uv_threshold=uv_threshold)

    B, Tp, _ = frames.shape
    N = B * Tp

    # Effective frame block: big for throughput, shrunk for tiny inputs.
    fb = max(8, min(int(frame_block), _round_up(-(-N // n_cores), 8)))
    N2 = _round_up(N, n_cores * fb)
    steps = N2 // (n_cores * fb)
    pad_rows = N2 - N

    # Flatten frame axis and pad.  Padded frames are neutralized by their
    # all-zero smooth/comp lifters (zero window alone is NOT enough: zero power
    # gives logp=log(1e-7) which yields a nonzero cepstrum).
    frames = jnp.pad(frames.reshape(N, fft_size), ((0, pad_rows), (0, 0)))
    windows = jnp.pad(windows.reshape(N, fft_size), ((0, pad_rows), (0, 0)))
    smooth = jnp.pad(smooth.reshape(N, pb), ((0, pad_rows), (0, 0)))
    comp = jnp.pad(comp.reshape(N, pb), ((0, pad_rows), (0, 0)))

    kernel = _make_kernel(fb, pb)
    partial = pl.pallas_call(
        kernel,
        out_shape=jax.ShapeDtypeStruct((n_cores * 8, pb), jnp.float32),
        grid=(n_cores, steps),
        in_specs=[
            pl.BlockSpec((fb, fft_size), lambda c, i: (c * steps + i, 0)),
            pl.BlockSpec((fb, fft_size), lambda c, i: (c * steps + i, 0)),
            pl.BlockSpec((fb, pb), lambda c, i: (c * steps + i, 0)),
            pl.BlockSpec((fb, pb), lambda c, i: (c * steps + i, 0)),
            pl.BlockSpec((fft_size, 2 * pb), lambda c, i: (0, 0)),
            pl.BlockSpec((pb, pb), lambda c, i: (0, 0)),
            pl.BlockSpec((pb, pb), lambda c, i: (0, 0)),
        ],
        out_specs=pl.BlockSpec((8, pb), lambda c, i: (c, 0)),
        compiler_params=pltpu.CompilerParams(
            dimension_semantics=("parallel", "arbitrary"),
            vmem_limit_bytes=32 * 1024 * 1024),
    )(frames, windows, smooth, comp,
      jnp.asarray(fused_dft), jnp.asarray(cos_c), jnp.asarray(cos_i))

    # nn.MSELoss(e, zeros) == mean(e**2) over (B, T', n_bins); padded frames/bins
    # contribute exactly zero, so divide by the real element count only.
    return jnp.sum(partial) / jnp.float32(N * n_bins)


# -----------------------------------------------------------------------------
# Pure-JAX reference (uses jnp.fft) for a correctness check
# -----------------------------------------------------------------------------
def reference_source_loss(s, f, *, sampling_rate, hop_size, fft_size, f0_floor,
                          f0_ceil, uv_threshold=0.0, q1=-0.15):
    n_bins = fft_size // 2 + 1
    window_tbl = jnp.asarray(build_window_table(sampling_rate, fft_size, f0_floor, f0_ceil))
    smooth_np, comp_np = build_lifter_tables(sampling_rate, fft_size, f0_floor, f0_ceil, q1)
    smooth_tbl = jnp.asarray(smooth_np)
    comp_tbl = jnp.asarray(comp_np)

    B, T = s.shape
    _, Tp = f.shape
    voiced = (f > uv_threshold).astype(f.dtype)
    fq = voiced * f + (1.0 - voiced) * f0_ceil
    fq = jnp.round(jnp.clip(fq, f0_floor, f0_ceil)).astype(jnp.int32)

    padded = jnp.pad(s.astype(jnp.float32), ((0, 0), (fft_size // 2, fft_size // 2)))
    idx = jnp.arange(Tp)[:, None] * hop_size + jnp.arange(fft_size)[None, :]
    frames = padded[:, idx]
    windows = window_tbl[fq]
    smooth = smooth_tbl[fq]
    comp = comp_tbl[fq]

    x = jnp.abs(jnp.fft.rfft(frames * windows, axis=-1)) ** 2
    tmp = jnp.concatenate([x, jnp.flip(x[..., 1:-1], axis=-1)], axis=-1)
    cep = jnp.real(jnp.fft.rfft(jnp.log(jnp.maximum(tmp, 1e-7)), axis=-1))
    lift = cep * smooth * comp
    env = jnp.fft.irfft(lift, axis=-1)[..., :n_bins]
    return jnp.mean(env ** 2)


if __name__ == "__main__":
    # Small synthetic configuration consistent with CheapTrick's constraints
    # (1.5 * sampling_rate / f0_floor must fit inside fft_size // 2).
    sampling_rate = 16000
    hop_size = 32
    fft_size = 128
    f0_floor = 400
    f0_ceil = 800

    B = 2
    Tp = 16                         # number of F0 frames
    T = hop_size * (Tp - 1)         # waveform length -> exactly Tp analysis frames

    key = jax.random.PRNGKey(0)
    k1, k2, k3 = jax.random.split(key, 3)
    s = 0.1 * jax.random.normal(k1, (B, T), dtype=jnp.float32)
    f_vals = jax.random.uniform(k2, (B, Tp), minval=float(f0_floor), maxval=float(f0_ceil))
    uv = jax.random.bernoulli(k3, 0.8, (B, Tp))
    f = jnp.where(uv, f_vals, 0.0).astype(jnp.float32)  # some unvoiced (0) frames

    loss = source_loss(s, f, sampling_rate=sampling_rate, hop_size=hop_size,
                       fft_size=fft_size, f0_floor=f0_floor, f0_ceil=f0_ceil,
                       uv_threshold=0.0, q1=-0.15)
    loss = jax.block_until_ready(loss)

    ref = reference_source_loss(s, f, sampling_rate=sampling_rate, hop_size=hop_size,
                                fft_size=fft_size, f0_floor=f0_floor, f0_ceil=f0_ceil,
                                uv_threshold=0.0, q1=-0.15)
    ref = jax.block_until_ready(ref)

    assert np.isfinite(float(loss))
    assert abs(float(loss) - float(ref)) <= 1e-2 * abs(float(ref)) + 1e-4, (float(loss), float(ref))
    print("KERNEL_OK")
</pallas_src>

<mosaic_0001>
module attributes {stable_mosaic.version = 11 : i64} {
  func.func @kernel(%arg0: i32, %arg1: i32, %arg2: memref<16x128xf32, #tpu.memory_space<vmem>>, %arg3: memref<16x128xf32, #tpu.memory_space<vmem>>, %arg4: memref<16x128xf32, #tpu.memory_space<vmem>>, %arg5: memref<16x128xf32, #tpu.memory_space<vmem>>, %arg6: memref<128x256xf32, #tpu.memory_space<vmem>>, %arg7: memref<128x128xf32, #tpu.memory_space<vmem>>, %arg8: memref<128x128xf32, #tpu.memory_space<vmem>>, %arg9: memref<8x128xf32, #tpu.memory_space<vmem>>) attributes {dimension_semantics = [#tpu.dimension_semantics<parallel>, #tpu.dimension_semantics<arbitrary>], iteration_bounds = array<i64: 2, 1>, scalar_prefetch = 0 : i64, scratch_operands = 0 : i64, tpu.core_type = #tpu.core_type<tc>, window_params = [{transform_indices = @transform_0, window_bounds = array<i64: 16, 128>}, {transform_indices = @transform_1, window_bounds = array<i64: 16, 128>}, {transform_indices = @transform_2, window_bounds = array<i64: 16, 128>}, {transform_indices = @transform_3, window_bounds = array<i64: 16, 128>}, {pipeline_mode = #tpu.pipeline_mode<synchronous>, transform_indices = @transform_4, window_bounds = array<i64: 128, 256>}, {pipeline_mode = #tpu.pipeline_mode<synchronous>, transform_indices = @transform_5, window_bounds = array<i64: 128, 128>}, {pipeline_mode = #tpu.pipeline_mode<synchronous>, transform_indices = @transform_6, window_bounds = array<i64: 128, 128>}, {transform_indices = @transform_7, window_bounds = array<i64: 8, 128>}]} {
    %c0_i32 = arith.constant 0 : i32
    %0 = arith.cmpi eq, %arg1, %c0_i32 : i32
    %1 = arith.extui %0 : i1 to i32
    %c0_i32_0 = arith.constant 0 : i32
    %2 = arith.cmpi ne, %1, %c0_i32_0 : i32
    scf.if %2 {
      %cst_22 = arith.constant 0.000000e+00 : f32
      %30 = vector.broadcast %cst_22 : f32 to vector<8x128xf32>
      %c0_23 = arith.constant 0 : index
      %c0_24 = arith.constant 0 : index
      %31 = vector.load %arg9[%c0_23, %c0_24] : memref<8x128xf32, #tpu.memory_space<vmem>>, vector<8x128xf32>
      tpu.vector_store %arg9[%c0_23, %c0_24], %30 {strides = array<i32>} : memref<8x128xf32, #tpu.memory_space<vmem>>, vector<8x128xf32>,
    } else {
    }
    %c0 = arith.constant 0 : index
    %c0_1 = arith.constant 0 : index
    %3 = vector.load %arg2[%c0, %c0_1] : memref<16x128xf32, #tpu.memory_space<vmem>>, vector<16x128xf32>
    %c0_2 = arith.constant 0 : index
    %c0_3 = arith.constant 0 : index
    %4 = vector.load %arg3[%c0_2, %c0_3] : memref<16x128xf32, #tpu.memory_space<vmem>>, vector<16x128xf32>
    %5 = arith.mulf %3, %4 : vector<16x128xf32>
    %c0_4 = arith.constant 0 : index
    %c0_5 = arith.constant 0 : index
    %6 = vector.load %arg6[%c0_4, %c0_5] : memref<128x256xf32, #tpu.memory_space<vmem>>, vector<128x256xf32>
    %cst = arith.constant dense<0.000000e+00> : vector<16x256xf32>
    %7 = tpu.matmul %5, %6, %cst {dimension_numbers = #tpu.dot_dimension_numbers<[1], [0], [0], [1], [0, 0, 1, 1], [], []>, precision = #tpu.contract_precision<fp32>} : vector<16x128xf32>, vector<128x256xf32>, vector<16x256xf32> -> vector<16x256xf32>
    %8 = vector.extract_strided_slice %7 {offsets = [0, 0], sizes = [16, 128], strides = [1, 1]} : vector<16x256xf32> to vector<16x128xf32>
    %9 = vector.extract_strided_slice %7 {offsets = [0, 128], sizes = [16, 128], strides = [1, 1]} : vector<16x256xf32> to vector<16x128xf32>
    %10 = arith.mulf %8, %8 : vector<16x128xf32>
    %11 = arith.mulf %9, %9 : vector<16x128xf32>
    %12 = arith.addf %10, %11 : vector<16x128xf32>
    %cst_6 = arith.constant 1.000000e-07 : f32
    %13 = vector.broadcast %cst_6 : f32 to vector<16x128xf32>
    %14 = arith.maximumf %12, %13 : vector<16x128xf32>
    %15 = math.log %14 : vector<16x128xf32>
    %c0_7 = arith.constant 0 : index
    %c0_8 = arith.constant 0 : index
    %16 = vector.load %arg7[%c0_7, %c0_8] : memref<128x128xf32, #tpu.memory_space<vmem>>, vector<128x128xf32>
    %cst_9 = arith.constant dense<0.000000e+00> : vector<16x128xf32>
    %17 = tpu.matmul %15, %16, %cst_9 {dimension_numbers = #tpu.dot_dimension_numbers<[1], [0], [0], [1], [0, 0, 1, 1], [], []>} : vector<16x128xf32>, vector<128x128xf32>, vector<16x128xf32> -> vector<16x128xf32>
    %c0_10 = arith.constant 0 : index
    %c0_11 = arith.constant 0 : index
    %18 = vector.load %arg4[%c0_10, %c0_11] : memref<16x128xf32, #tpu.memory_space<vmem>>, vector<16x128xf32>
    %19 = arith.mulf %17, %18 : vector<16x128xf32>
    %c0_12 = arith.constant 0 : index
    %c0_13 = arith.constant 0 : index
    %20 = vector.load %arg5[%c0_12, %c0_13] : memref<16x128xf32, #tpu.memory_space<vmem>>, vector<16x128xf32>
    %21 = arith.mulf %19, %20 : vector<16x128xf32>
    %c0_14 = arith.constant 0 : index
    %c0_15 = arith.constant 0 : index
    %22 = vector.load %arg8[%c0_14, %c0_15] : memref<128x128xf32, #tpu.memory_space<vmem>>, vector<128x128xf32>
    %cst_16 = arith.constant dense<0.000000e+00> : vector<16x128xf32>
    %23 = tpu.matmul %21, %22, %cst_16 {dimension_numbers = #tpu.dot_dimension_numbers<[1], [0], [0], [1], [0, 0, 1, 1], [], []>} : vector<16x128xf32>, vector<128x128xf32>, vector<16x128xf32> -> vector<16x128xf32>
    %24 = arith.mulf %23, %23 : vector<16x128xf32>
    %c0_17 = arith.constant 0 : index
    %c0_18 = arith.constant 0 : index
    %25 = vector.load %arg9[%c0_17, %c0_18] : memref<8x128xf32, #tpu.memory_space<vmem>>, vector<8x128xf32>
    %26 = vector.shape_cast %24 : vector<16x128xf32> to vector<2x8x128xf32>
    %cst_19 = arith.constant dense<0.000000e+00> : vector<8x128xf32>
    %27 = vector.multi_reduction <add>, %26, %cst_19 [0] : vector<2x8x128xf32> to vector<8x128xf32>
    %28 = arith.addf %25, %27 : vector<8x128xf32>
    %c0_20 = arith.constant 0 : index
    %c0_21 = arith.constant 0 : index
    %29 = vector.load %arg9[%c0_20, %c0_21] : memref<8x128xf32, #tpu.memory_space<vmem>>, vector<8x128xf32>
    tpu.vector_store %arg9[%c0_20, %c0_21], %28 {strides = array<i32>} : memref<8x128xf32, #tpu.memory_space<vmem>>, vector<8x128xf32>,
    return
  }
  func.func @transform_0(%arg0: i32, %arg1: i32) -> (i32, i32) {
    %c1_i32 = arith.constant 1 : i32
    %0 = arith.muli %arg0, %c1_i32 : i32
    %1 = arith.addi %0, %arg1 : i32
    %c0_i32 = arith.constant 0 : i32
    %c0_i32_0 = arith.constant 0 : i32
    return %1, %c0_i32 : i32, i32
  }
  func.func @transform_1(%arg0: i32, %arg1: i32) -> (i32, i32) {
    %c1_i32 = arith.constant 1 : i32
    %0 = arith.muli %arg0, %c1_i32 : i32
    %1 = arith.addi %0, %arg1 : i32
    %c0_i32 = arith.constant 0 : i32
    %c0_i32_0 = arith.constant 0 : i32
    return %1, %c0_i32 : i32, i32
  }
  func.func @transform_2(%arg0: i32, %arg1: i32) -> (i32, i32) {
    %c1_i32 = arith.constant 1 : i32
    %0 = arith.muli %arg0, %c1_i32 : i32
    %1 = arith.addi %0, %arg1 : i32
    %c0_i32 = arith.constant 0 : i32
    %c0_i32_0 = arith.constant 0 : i32
    return %1, %c0_i32 : i32, i32
  }
  func.func @transform_3(%arg0: i32, %arg1: i32) -> (i32, i32) {
    %c1_i32 = arith.constant 1 : i32
    %0 = arith.muli %arg0, %c1_i32 : i32
    %1 = arith.addi %0, %arg1 : i32
    %c0_i32 = arith.constant 0 : i32
    %c0_i32_0 = arith.constant 0 : i32
    return %1, %c0_i32 : i32, i32
  }
  func.func @transform_4(%arg0: i32, %arg1: i32) -> (i32, i32) {
    %c0_i32 = arith.constant 0 : i32
    %c0_i32_0 = arith.constant 0 : i32
    %c0_i32_1 = arith.constant 0 : i32
    return %c0_i32, %c0_i32_0 : i32, i32
  }
  func.func @transform_5(%arg0: i32, %arg1: i32) -> (i32, i32) {
    %c0_i32 = arith.constant 0 : i32
    %c0_i32_0 = arith.constant 0 : i32
    %c0_i32_1 = arith.constant 0 : i32
    return %c0_i32, %c0_i32_0 : i32, i32
  }
  func.func @transform_6(%arg0: i32, %arg1: i32) -> (i32, i32) {
    %c0_i32 = arith.constant 0 : i32
    %c0_i32_0 = arith.constant 0 : i32
    %c0_i32_1 = arith.constant 0 : i32
    return %c0_i32, %c0_i32_0 : i32, i32
  }
  func.func @transform_7(%arg0: i32, %arg1: i32) -> (i32, i32) {
    %c0_i32 = arith.constant 0 : i32
    %c0_i32_0 = arith.constant 0 : i32
    return %arg0, %c0_i32 : i32, i32
  }
}

</mosaic_0001>

<llo_original>
// kernel: tpu_custom_call.1
$region0: #{tpu_custom_call.1}
  #allocation0 [shape = 'u32[]', space=smem, size = 0x4, offset = 0x4, fixed_abs, tag = 'smem constant byte address 0x4 - core index']
  #allocation1 [shape = 'u32[144,128]{1,0:T(1,128)}', space=vmem, size = 0x12000, scoped, tag = 'internal scratch']
  %s0 = inlined_call_operand.hbm [shape: f32[32,128], index: 0, kind: input, shape index: {}]
  %s1 = inlined_call_operand.hbm [shape: f32[32,128], index: 1, kind: input, shape index: {}]
  %s2 = inlined_call_operand.hbm [shape: f32[32,128], index: 2, kind: input, shape index: {}]
  %s3 = inlined_call_operand.hbm [shape: f32[32,128], index: 3, kind: input, shape index: {}]
  %s4 = inlined_call_operand.hbm [shape: f32[128,256], index: 4, kind: input, shape index: {}]
  %s5 = inlined_call_operand.hbm [shape: f32[128,128], index: 5, kind: input, shape index: {}]
  %s6 = inlined_call_operand.hbm [shape: f32[128,128], index: 6, kind: input, shape index: {}]
  %s7 = inlined_call_operand.hbm [shape: f32[16,128], index: 7, kind: output, shape index: {}]
  %s8 = sld [smem:[#allocation0]]
  $region93: #{tpu_custom_call.1} parent=0
    _
  %s10 = ssub.s32 1, %s8
  %s11 = scalar_select 0, %s10, %s8
  $region1: #{tpu_custom_call.1} parent=0
    #allocation2 [shape = 'u8[16384]{0}', space=vmem, size = 0x4000, scoped, tag = 'input window, operand 0']
    #allocation3 [shape = 's32[2]{0}', space=sflag, size = 0x8, scoped, tag = 'scoped memory for tpu_custom_call.1']
    #allocation4 [shape = 's32[2]{0}', space=sflag, size = 0x8, scoped, tag = 'scoped memory for tpu_custom_call.1']
    #allocation5 [shape = 'u8[16384]{0}', space=vmem, size = 0x4000, scoped, tag = 'input window, operand 1']
    #allocation6 [shape = 's32[2]{0}', space=sflag, size = 0x8, scoped, tag = 'scoped memory for tpu_custom_call.1']
    #allocation7 [shape = 'u8[16384]{0}', space=vmem, size = 0x4000, scoped, tag = 'input window, operand 2']
    #allocation8 [shape = 'u8[16384]{0}', space=vmem, size = 0x4000, scoped, tag = 'input window, operand 3']
    #allocation9 [shape = 's32[2]{0}', space=sflag, size = 0x8, scoped, tag = 'scoped memory for tpu_custom_call.1']
    #allocation10 [shape = 'u8[131072]{0}', space=vmem, size = 0x20000, scoped, tag = 'input window, operand 4, single buffered']
    #allocation11 [shape = 'u8[65536]{0}', space=vmem, size = 0x10000, scoped, tag = 'input window, operand 5, single buffered']
    #allocation12 [shape = 's32[1]{0}', space=sflag, size = 0x4, scoped, tag = 'scoped memory for tpu_custom_call.1']
    #allocation13 [shape = 'u8[65536]{0}', space=vmem, size = 0x10000, scoped, tag = 'input window, operand 6, single buffered']
    #allocation14 [shape = 'u8[8192]{0}', space=vmem, size = 0x2000, scoped, tag = 'output window, operand 0']
    %12 = vsyncpa [#allocation3], 0
    %s13 = scalar_lea.sflag [#allocation3], 1
    %14 = vsyncpa %s13, 0
    %15 = vsyncpa [#allocation6], 0
    %s16 = scalar_lea.sflag [#allocation6], 1
    %17 = vsyncpa %s16, 0
    %18 = vsyncpa [#allocation9], 0
    %s19 = scalar_lea.sflag [#allocation9], 1
    %20 = vsyncpa %s19, 0
    %21 = vsyncpa [#allocation12], 0
    %22 = vsyncpa [#allocation4], 0
    %s23 = scalar_lea.sflag [#allocation4], 1
    %24 = vsyncpa %s23, 0
    loop: start=0, step=1, limit=4
    $region2: #{tpu_custom_call.1} parent=1 // loop_pre_header
      _
    $region3: #{tpu_custom_call.1} parent=1 // loop_header
      %s26 = sphi 0, %s30
      %p27 = scmp.ge.s32.totalorder %s26, 4
      %s33 = sphi 0, %s45
      %s34 = sphi 0, %s41
      %s35 = sphi 0, %s33
      %s36 = sphi 0, %s34
      %s37 = sphi 0, %s35
      %s38 = sphi 0, %s36
      %s50 = sphi 0, %s52
      %s53 = sphi 0, %s50
      %s54 = sphi 0, %s53
      %s70 = sphi 0, %s54
      %s78 = sphi 0, %s80
      %s81 = sphi 0, %s78
      %s82 = sphi 0, %s81
      %s98 = sphi 0, %s82
      %s106 = sphi 0, %s108
      %s109 = sphi 0, %s106
      %s110 = sphi 0, %s109
      %s126 = sphi 0, %s110
      %s134 = sphi 0, %s136
      %s137 = sphi 0, %s134
      %s138 = sphi 0, %s137
      %s154 = sphi 0, %s138
      %s158 = sphi 0, %s158
      %s160 = sphi 0, %s158
      %s161 = sphi 0, %s160
      %s175 = sphi 0, %s161
      %s179 = sphi 0, %s179
      %s181 = sphi 0, %s179
      %s182 = sphi 0, %s181
      %s196 = sphi 0, %s182
      %s200 = sphi 0, %s200
      %s202 = sphi 0, %s200
      %s203 = sphi 0, %s202
      %s217 = sphi 0, %s203
      %s223 = sphi 0, %s225
      %s226 = sphi 0, %s223
      %s227 = sphi 0, %s226
      %s243 = sphi 0, %s227
    $region4: #{tpu_custom_call.1} parent=1 // loop_header_branch
      %29 = sbr.rel (%p27) target = $region8
    $region5: #{tpu_custom_call.1} parent=1 // loop_body
      %s31 = ssub.s32 %s26, 1
      %s32 = ssub.s32 %s26, 2
      %s39 = sadd.s32 1, %s34
      %p40 = scmp.ge.s32.totalorder %s39, 1
      %s41 = scalar_select %p40, 0, %s39
      %s42 = sadd.s32 1, %s33
      %s43 = scalar_select %p40, %s42, %s33
      %p44 = scmp.ge.s32.totalorder %s43, 2
      %s45 = scalar_select %p44, 0, %s43
      %s46 = sadd.s32 %s33, %s34
      %s47 = sadd.s32 %s45, %s41
      %s48 = ssub.s32 %s46, %s47
      %p49 = scmp.eq.s32.totalorder %s48, 0
      %s51 = sadd.s32 %s50, 1
      %s52 = scalar_select %p49, %s50, %s51
      %p55 = pneg %p49
      %p56 = scmp.eq.s32.totalorder %s26, 1
      %p57 = por %p55, %p56
      %p58 = scmp.ne.s32.totalorder %s50, %s53
      %p59 = scmp.eq.s32.totalorder %s26, 0
      %p60 = por %p58, %p59
      %p61 = scmp.ne.s32.totalorder %s50, %s53
      %p62 = scmp.eq.s32.totalorder %s31, 1
      %p63 = por %p61, %p62
      %p64 = scmp.ne.s32.totalorder %s53, %s54
      %p65 = scmp.eq.s32.totalorder %s31, 0
      %p66 = por %p64, %p65
      %p67 = scmp.ne.s32.totalorder %s53, %s54
      %p68 = scmp.eq.s32.totalorder %s32, 1
      %p69 = por %p67, %p68
      %p71 = scmp.ne.s32.totalorder %s54, %s70
      %p72 = scmp.eq.s32.totalorder %s32, 0
      %p73 = por %p71, %p72
      %s74 = sadd.s32 %s33, %s34
      %s75 = sadd.s32 %s45, %s41
      %s76 = ssub.s32 %s74, %s75
      %p77 = scmp.eq.s32.totalorder %s76, 0
      %s79 = sadd.s32 %s78, 1
      %s80 = scalar_select %p77, %s78, %s79
      %p83 = pneg %p77
      %p84 = scmp.eq.s32.totalorder %s26, 1
      %p85 = por %p83, %p84
      %p86 = scmp.ne.s32.totalorder %s78, %s81
      %p87 = scmp.eq.s32.totalorder %s26, 0
      %p88 = por %p86, %p87
      %p89 = scmp.ne.s32.totalorder %s78, %s81
      %p90 = scmp.eq.s32.totalorder %s31, 1
      %p91 = por %p89, %p90
      %p92 = scmp.ne.s32.totalorder %s81, %s82
      %p93 = scmp.eq.s32.totalorder %s31, 0
      %p94 = por %p92, %p93
      %p95 = scmp.ne.s32.totalorder %s81, %s82
      %p96 = scmp.eq.s32.totalorder %s32, 1
      %p97 = por %p95, %p96
      %p99 = scmp.ne.s32.totalorder %s82, %s98
      %p100 = scmp.eq.s32.totalorder %s32, 0
      %p101 = por %p99, %p100
      %s102 = sadd.s32 %s33, %s34
      %s103 = sadd.s32 %s45, %s41
      %s104 = ssub.s32 %s102, %s103
      %p105 = scmp.eq.s32.totalorder %s104, 0
      %s107 = sadd.s32 %s106, 1
      %s108 = scalar_select %p105, %s106, %s107
      %p111 = pneg %p105
      %p112 = scmp.eq.s32.totalorder %s26, 1
      %p113 = por %p111, %p112
      %p114 = scmp.ne.s32.totalorder %s106, %s109
      %p115 = scmp.eq.s32.totalorder %s26, 0
      %p116 = por %p114, %p115
      %p117 = scmp.ne.s32.totalorder %s106, %s109
      %p118 = scmp.eq.s32.totalorder %s31, 1
      %p119 = por %p117, %p118
      %p120 = scmp.ne.s32.totalorder %s109, %s110
      %p121 = scmp.eq.s32.totalorder %s31, 0
      %p122 = por %p120, %p121
      %p123 = scmp.ne.s32.totalorder %s109, %s110
      %p124 = scmp.eq.s32.totalorder %s32, 1
      %p125 = por %p123, %p124
      %p127 = scmp.ne.s32.totalorder %s110, %s126
      %p128 = scmp.eq.s32.totalorder %s32, 0
      %p129 = por %p127, %p128
      %s130 = sadd.s32 %s33, %s34
      %s131 = sadd.s32 %s45, %s41
      %s132 = ssub.s32 %s130, %s131
      %p133 = scmp.eq.s32.totalorder %s132, 0
      %s135 = sadd.s32 %s134, 1
      %s136 = scalar_select %p133, %s134, %s135
      %p139 = pneg %p133
      %p140 = scmp.eq.s32.totalorder %s26, 1
      %p141 = por %p139, %p140
      %p142 = scmp.ne.s32.totalorder %s134, %s137
      %p143 = scmp.eq.s32.totalorder %s26, 0
      %p144 = por %p142, %p143
      %p145 = scmp.ne.s32.totalorder %s134, %s137
      %p146 = scmp.eq.s32.totalorder %s31, 1
      %p147 = por %p145, %p146
      %p148 = scmp.ne.s32.totalorder %s137, %s138
      %p149 = scmp.eq.s32.totalorder %s31, 0
      %p150 = por %p148, %p149
      %p151 = scmp.ne.s32.totalorder %s137, %s138
      %p152 = scmp.eq.s32.totalorder %s32, 1
      %p153 = por %p151, %p152
      %p155 = scmp.ne.s32.totalorder %s138, %s154
      %p156 = scmp.eq.s32.totalorder %s32, 0
      %p157 = por %p155, %p156
      %s159 = sadd.s32 %s158, 1
      %p162 = scmp.eq.s32.totalorder %s26, 1
      %p163 = scmp.ne.s32.totalorder %s158, %s160
      %p164 = scmp.eq.s32.totalorder %s26, 0
      %p165 = por %p163, %p164
      %p166 = scmp.ne.s32.totalorder %s158, %s160
      %p167 = scmp.eq.s32.totalorder %s31, 1
      %p168 = por %p166, %p167
      %p169 = scmp.ne.s32.totalorder %s160, %s161
      %p170 = scmp.eq.s32.totalorder %s31, 0
      %p171 = por %p169, %p170
      %p172 = scmp.ne.s32.totalorder %s160, %s161
      %p173 = scmp.eq.s32.totalorder %s32, 1
      %p174 = por %p172, %p173
      %p176 = scmp.ne.s32.totalorder %s161, %s175
      %p177 = scmp.eq.s32.totalorder %s32, 0
      %p178 = por %p176, %p177
      %s180 = sadd.s32 %s179, 1
      %p183 = scmp.eq.s32.totalorder %s26, 1
      %p184 = scmp.ne.s32.totalorder %s179, %s181
      %p185 = scmp.eq.s32.totalorder %s26, 0
      %p186 = por %p184, %p185
      %p187 = scmp.ne.s32.totalorder %s179, %s181
      %p188 = scmp.eq.s32.totalorder %s31, 1
      %p189 = por %p187, %p188
      %p190 = scmp.ne.s32.totalorder %s181, %s182
      %p191 = scmp.eq.s32.totalorder %s31, 0
      %p192 = por %p190, %p191
      %p193 = scmp.ne.s32.totalorder %s181, %s182
      %p194 = scmp.eq.s32.totalorder %s32, 1
      %p195 = por %p193, %p194
      %p197 = scmp.ne.s32.totalorder %s182, %s196
      %p198 = scmp.eq.s32.totalorder %s32, 0
      %p199 = por %p197, %p198
      %s201 = sadd.s32 %s200, 1
      %p204 = scmp.eq.s32.totalorder %s26, 1
      %p205 = scmp.ne.s32.totalorder %s200, %s202
      %p206 = scmp.eq.s32.totalorder %s26, 0
      %p207 = por %p205, %p206
      %p208 = scmp.ne.s32.totalorder %s200, %s202
      %p209 = scmp.eq.s32.totalorder %s31, 1
      %p210 = por %p208, %p209
      %p211 = scmp.ne.s32.totalorder %s202, %s203
      %p212 = scmp.eq.s32.totalorder %s31, 0
      %p213 = por %p211, %p212
      %p214 = scmp.ne.s32.totalorder %s202, %s203
      %p215 = scmp.eq.s32.totalorder %s32, 1
      %p216 = por %p214, %p215
      %p218 = scmp.ne.s32.totalorder %s203, %s217
      %p219 = scmp.eq.s32.totalorder %s32, 0
      %p220 = por %p218, %p219
      %s221 = ssub.s32 %s33, %s45
      %p222 = scmp.eq.s32.totalorder %s221, 0
      %s224 = sadd.s32 %s223, 1
      %s225 = scalar_select %p222, %s223, %s224
      %p228 = pneg %p222
      %p229 = scmp.eq.s32.totalorder %s26, 1
      %p230 = por %p228, %p229
      %p231 = scmp.ne.s32.totalorder %s223, %s226
      %p232 = scmp.eq.s32.totalorder %s26, 0
      %p233 = por %p231, %p232
      %p234 = scmp.ne.s32.totalorder %s223, %s226
      %p235 = scmp.eq.s32.totalorder %s31, 1
      %p236 = por %p234, %p235
      %p237 = scmp.ne.s32.totalorder %s226, %s227
      %p238 = scmp.eq.s32.totalorder %s31, 0
      %p239 = por %p237, %p238
      %p240 = scmp.ne.s32.totalorder %s226, %s227
      %p241 = scmp.eq.s32.totalorder %s32, 1
      %p242 = por %p240, %p241
      %p244 = scmp.ne.s32.totalorder %s227, %s243
      %p245 = scmp.eq.s32.totalorder %s32, 0
      %p246 = por %p244, %p245
      %p247 = scmp.le.s32.totalorder 1, %s26
      %p248 = scmp.lt.s32.totalorder %s26, 3
      %p249 = pnand %p247, %p248
      %p250 = pneg %p249
      // Predicated region
      $region9: #{tpu_custom_call.1} parent=5 // pred_check
        _
      $region10: #{tpu_custom_call.1} parent=5 // pred_check_branch
        %252 = sbr.rel (%p249) target = $region12
      $region11: #{tpu_custom_call.1} parent=5 // pred_region
        %s253 = ssub.s32 %s26, 1
        // Predicated region
        $region13: #{tpu_custom_call.1} parent=11 // pred_check
          %p254 = pneg %p171
        $region14: #{tpu_custom_call.1} parent=11 // pred_check_branch
          %256 = sbr.rel (%p254) target = $region16
        $region15: #{tpu_custom_call.1} parent=11 // pred_region
          %s258 = ssub.s32 4096, 4096
          %259 = vsyncadd [#allocation9], %s258
          %s260 = sshll.u32 [#allocation10], 4
          %s261 = int_to_ptr.vmem [resolvable:$true] %s260
          %266 = dma.hbm_to_vmem [thread:$0]  %s4, 4096, %s261, [#allocation9], 256, 256, 16
        $region16: #{tpu_custom_call.1} parent=11 // pred_fallthru
          _
        // Predicated region
        $region17: #{tpu_custom_call.1} parent=11 // pred_check
          %p267 = pneg %p192
        $region18: #{tpu_custom_call.1} parent=11 // pred_check_branch
          %269 = sbr.rel (%p267) target = $region20
        $region19: #{tpu_custom_call.1} parent=11 // pred_region
          %s271 = ssub.s32 2048, 2048
          %272 = vsyncadd [#allocation12], %s271
          %s273 = sshll.u32 [#allocation11], 4
          %s274 = int_to_ptr.vmem [resolvable:$true] %s273
          %279 = dma.hbm_to_vmem [thread:$0]  %s5, 2048, %s274, [#allocation12], 128, 128, 8
        $region20: #{tpu_custom_call.1} parent=11 // pred_fallthru
          _
        // Predicated region
        $region21: #{tpu_custom_call.1} parent=11 // pred_check
          %p280 = pneg %p213
        $region22: #{tpu_custom_call.1} parent=11 // pred_check_branch
          %282 = sbr.rel (%p280) target = $region24
        $region23: #{tpu_custom_call.1} parent=11 // pred_region
          %s284 = ssub.s32 2048, 2048
          %285 = vsyncadd [#allocation12], %s284
          %s286 = sshll.u32 [#allocation13], 4
          %s287 = int_to_ptr.vmem [resolvable:$true] %s286
          %292 = dma.hbm_to_vmem [thread:$0]  %s6, 2048, %s287, [#allocation12], 128, 128, 8
        $region24: #{tpu_custom_call.1} parent=11 // pred_fallthru
          _
      $region12: #{tpu_custom_call.1} parent=5 // pred_fallthru
        _
      %p293 = scmp.lt.s32.totalorder %s26, 2
      // Predicated region
      $region25: #{tpu_custom_call.1} parent=5 // pred_check
        %p294 = pneg %p293
      $region26: #{tpu_custom_call.1} parent=5 // pred_check_branch
        %296 = sbr.rel (%p294) target = $region28
      $region27: #{tpu_custom_call.1} parent=5 // pred_region
        // Predicated region
        $region29: #{tpu_custom_call.1} parent=27 // pred_check
          %p297 = pneg %p60
        $region30: #{tpu_custom_call.1} parent=27 // pred_check_branch
          %299 = sbr.rel (%p297) target = $region32
        $region31: #{tpu_custom_call.1} parent=27 // pred_region
          %s300 = sand.u32 %s50, 1
          %s301 = scalar_lea.sflag [#allocation3], %s300
          %s302 = sand.u32 %s50, 1
          %s303 = smul.addr %s302, 16
          %s304 = scalar_lea.vmem [#allocation2], %s303
          %s305 = sadd.s32 %s33, %s34
          %s306 = smul.u32 2, %s305
          %s308 = ssub.s32 256, 256
          %309 = vsyncadd %s301, %s308
          %s310 = smul.addr %s306, 128
          %s311 = scalar_lea.hbm %s0, %s310
          %s312 = sshll.u32 %s304, 4
          %s313 = int_to_ptr.vmem [resolvable:$true] %s312
          %318 = dma.hbm_to_vmem [thread:$0]  %s311, 256, %s313, %s301, 128, 128, 8
        $region32: #{tpu_custom_call.1} parent=27 // pred_fallthru
          _
        // Predicated region
        $region33: #{tpu_custom_call.1} parent=27 // pred_check
          %p319 = pneg %p88
        $region34: #{tpu_custom_call.1} parent=27 // pred_check_branch
          %321 = sbr.rel (%p319) target = $region36
        $region35: #{tpu_custom_call.1} parent=27 // pred_region
          %s322 = sand.u32 %s26, 1
          %s323 = scalar_lea.sflag [#allocation6], %s322
          %s324 = sand.u32 %s78, 1
          %s325 = smul.addr %s324, 16
          %s326 = scalar_lea.vmem [#allocation5], %s325
          %s327 = sadd.s32 %s33, %s34
          %s328 = smul.u32 2, %s327
          %s330 = ssub.s32 256, 256
          %331 = vsyncadd %s323, %s330
          %s332 = smul.addr %s328, 128
          %s333 = scalar_lea.hbm %s1, %s332
          %s334 = sshll.u32 %s326, 4
          %s335 = int_to_ptr.vmem [resolvable:$true] %s334
          %340 = dma.hbm_to_vmem [thread:$0]  %s333, 256, %s335, %s323, 128, 128, 8
        $region36: #{tpu_custom_call.1} parent=27 // pred_fallthru
          _
        // Predicated region
        $region37: #{tpu_custom_call.1} parent=27 // pred_check
          %p341 = pneg %p116
        $region38: #{tpu_custom_call.1} parent=27 // pred_check_branch
          %343 = sbr.rel (%p341) target = $region40
        $region39: #{tpu_custom_call.1} parent=27 // pred_region
          %s344 = sand.u32 %s26, 1
          %s345 = scalar_lea.sflag [#allocation6], %s344
          %s346 = sand.u32 %s106, 1
          %s347 = smul.addr %s346, 16
          %s348 = scalar_lea.vmem [#allocation7], %s347
          %s349 = sadd.s32 %s33, %s34
          %s350 = smul.u32 2, %s349
          %s352 = ssub.s32 256, 256
          %353 = vsyncadd %s345, %s352
          %s354 = smul.addr %s350, 128
          %s355 = scalar_lea.hbm %s2, %s354
          %s356 = sshll.u32 %s348, 4
          %s357 = int_to_ptr.vmem [resolvable:$true] %s356
          %362 = dma.hbm_to_vmem [thread:$0]  %s355, 256, %s357, %s345, 128, 128, 8
        $region40: #{tpu_custom_call.1} parent=27 // pred_fallthru
          _
        // Predicated region
        $region41: #{tpu_custom_call.1} parent=27 // pred_check
          %p363 = pneg %p144
        $region42: #{tpu_custom_call.1} parent=27 // pred_check_branch
          %365 = sbr.rel (%p363) target = $region44
        $region43: #{tpu_custom_call.1} parent=27 // pred_region
          %s366 = sand.u32 %s26, 1
          %s367 = scalar_lea.sflag [#allocation9], %s366
          %s368 = sand.u32 %s134, 1
          %s369 = smul.addr %s368, 16
          %s370 = scalar_lea.vmem [#allocation8], %s369
          %s371 = sadd.s32 %s33, %s34
          %s372 = smul.u32 2, %s371
          %s374 = ssub.s32 256, 256
          %375 = vsyncadd %s367, %s374
          %s376 = smul.addr %s372, 128
          %s377 = scalar_lea.hbm %s3, %s376
          %s378 = sshll.u32 %s370, 4
          %s379 = int_to_ptr.vmem [resolvable:$true] %s378
          %384 = dma.hbm_to_vmem [thread:$0]  %s377, 256, %s379, %s367, 128, 128, 8
        $region44: #{tpu_custom_call.1} parent=27 // pred_fallthru
          _
      $region28: #{tpu_custom_call.1} parent=5 // pred_fallthru
        _
      %p385 = scmp.le.s32.totalorder 1, %s26
      %p386 = scmp.lt.s32.totalorder %s26, 3
      %p387 = pnand %p385, %p386
      %p388 = pneg %p387
      // Predicated region
      $region45: #{tpu_custom_call.1} parent=5 // pred_check
        _
      $region46: #{tpu_custom_call.1} parent=5 // pred_check_branch
        %390 = sbr.rel (%p387) target = $region48
      $region47: #{tpu_custom_call.1} parent=5 // pred_region
        %s391 = ssub.s32 %s26, 1
        %s392 = sand.u32 %s53, 1
        %s393 = scalar_lea.sflag [#allocation3], %s392
        %s394 = sand.u32 %s53, 1
        %s395 = smul.addr %s394, 16
        %s396 = scalar_lea.vmem [#allocation2], %s395
        // Predicated region
        $region49: #{tpu_custom_call.1} parent=47 // pred_check
          %p397 = pneg %p66
        $region50: #{tpu_custom_call.1} parent=47 // pred_check_branch
          %399 = sbr.rel (%p397) target = $region52
        $region51: #{tpu_custom_call.1} parent=47 // pred_region
          %400 = dma.done %s393, 256
        $region52: #{tpu_custom_call.1} parent=47 // pred_fallthru
          _
        %s401 = sand.u32 %s31, 1
        %s402 = scalar_lea.sflag [#allocation6], %s401
        %s403 = sand.u32 %s81, 1
        %s404 = smul.addr %s403, 16
        %s405 = scalar_lea.vmem [#allocation5], %s404
        // Predicated region
        $region53: #{tpu_custom_call.1} parent=47 // pred_check
          %p406 = pneg %p94
        $region54: #{tpu_custom_call.1} parent=47 // pred_check_branch
          %408 = sbr.rel (%p406) target = $region56
        $region55: #{tpu_custom_call.1} parent=47 // pred_region
          %409 = dma.done %s402, 256
        $region56: #{tpu_custom_call.1} parent=47 // pred_fallthru
          _
        %s410 = sand.u32 %s31, 1
        %s411 = scalar_lea.sflag [#allocation6], %s410
        %s412 = sand.u32 %s109, 1
        %s413 = smul.addr %s412, 16
        %s414 = scalar_lea.vmem [#allocation7], %s413
        // Predicated region
        $region57: #{tpu_custom_call.1} parent=47 // pred_check
          %p415 = pneg %p122
        $region58: #{tpu_custom_call.1} parent=47 // pred_check_branch
          %417 = sbr.rel (%p415) target = $region60
        $region59: #{tpu_custom_call.1} parent=47 // pred_region
          %418 = dma.done %s411, 256
        $region60: #{tpu_custom_call.1} parent=47 // pred_fallthru
          _
        %s419 = sand.u32 %s31, 1
        %s420 = scalar_lea.sflag [#allocation9], %s419
        %s421 = sand.u32 %s137, 1
        %s422 = smul.addr %s421, 16
        %s423 = scalar_lea.vmem [#allocation8], %s422
        // Predicated region
        $region61: #{tpu_custom_call.1} parent=47 // pred_check
          %p424 = pneg %p150
        $region62: #{tpu_custom_call.1} parent=47 // pred_check_branch
          %426 = sbr.rel (%p424) target = $region64
        $region63: #{tpu_custom_call.1} parent=47 // pred_region
          %427 = dma.done %s420, 256
        $region64: #{tpu_custom_call.1} parent=47 // pred_fallthru
          _
        // Predicated region
        $region65: #{tpu_custom_call.1} parent=47 // pred_check
          %p428 = pneg %p171
        $region66: #{tpu_custom_call.1} parent=47 // pred_check_branch
          %430 = sbr.rel (%p428) target = $region68
        $region67: #{tpu_custom_call.1} parent=47 // pred_region
          %431 = dma.done [#allocation9], 4096
        $region68: #{tpu_custom_call.1} parent=47 // pred_fallthru
          _
        // Predicated region
        $region69: #{tpu_custom_call.1} parent=47 // pred_check
          %p432 = pneg %p192
        $region70: #{tpu_custom_call.1} parent=47 // pred_check_branch
          %434 = sbr.rel (%p432) target = $region72
        $region71: #{tpu_custom_call.1} parent=47 // pred_region
          %435 = dma.done [#allocation12], 2048
        $region72: #{tpu_custom_call.1} parent=47 // pred_fallthru
          _
        // Predicated region
        $region73: #{tpu_custom_call.1} parent=47 // pred_check
          %p436 = pneg %p213
        $region74: #{tpu_custom_call.1} parent=47 // pred_check_branch
          %438 = sbr.rel (%p436) target = $region76
        $region75: #{tpu_custom_call.1} parent=47 // pred_region
          %439 = dma.done [#allocation12], 2048
        $region76: #{tpu_custom_call.1} parent=47 // pred_fallthru
          _
        %s440 = sand.u32 %s53, 1
        %s441 = scalar_lea.sflag [#allocation3], %s440
        %s442 = sand.u32 %s53, 1
        %s443 = smul.addr %s442, 16
        %s444 = scalar_lea.vmem [#allocation2], %s443
        %p445 = pneg %p66
        %p446 = pneg %p63
        %s447 = sand.u32 %s31, 1
        %s448 = scalar_lea.sflag [#allocation6], %s447
        %s449 = sand.u32 %s81, 1
        %s450 = smul.addr %s449, 16
        %s451 = scalar_lea.vmem [#allocation5], %s450
        %p452 = pneg %p94
        %p453 = pneg %p91
        %s454 = sand.u32 %s31, 1
        %s455 = scalar_lea.sflag [#allocation6], %s454
        %s456 = sand.u32 %s109, 1
        %s457 = smul.addr %s456, 16
        %s458 = scalar_lea.vmem [#allocation7], %s457
        %p459 = pneg %p122
        %p460 = pneg %p119
        %s461 = sand.u32 %s31, 1
        %s462 = scalar_lea.sflag [#allocation9], %s461
        %s463 = sand.u32 %s137, 1
        %s464 = smul.addr %s463, 16
        %s465 = scalar_lea.vmem [#allocation8], %s464
        %p466 = pneg %p150
        %p467 = pneg %p147
        %p468 = pneg %p171
        %p469 = pneg %p168
        %p470 = pneg %p192
        %p471 = pneg %p189
        %p472 = pneg %p213
        %p473 = pneg %p210
        %p474 = pneg %p239
        %p475 = pneg %p236
        %s476 = sand.u32 %s226, 1
        %s477 = scalar_lea.sflag [#allocation4], %s476
        %s478 = sand.u32 %s226, 1
        %s479 = smul.addr %s478, 8
        %s480 = scalar_lea.vmem [#allocation14], %s479
        %s481 = sadd.s32 %s35, %s36
        %s482 = smul.u32 2, %s481
        %s483 = sadd.s32 %s35, %s36
        %s484 = smul.u32 2, %s483
        %s485 = sadd.s32 %s35, %s36
        %s486 = smul.u32 2, %s485
        %s487 = sadd.s32 %s35, %s36
        %s488 = smul.u32 2, %s487
        %p489 = scmp.eq.s32.totalorder %s36, 0
        // Predicated region
        $region77: #{tpu_custom_call.1} parent=47 // pred_check
          %p490 = pneg %p489
        $region78: #{tpu_custom_call.1} parent=47 // pred_check_branch
          %492 = sbr.rel (%p490) target = $region80
        $region79: #{tpu_custom_call.1} parent=47 // pred_region
          %493 = vst [vmem:[%s480] sm:$0xff] 0.0
        $region80: #{tpu_custom_call.1} parent=47 // pred_fallthru
          _
        %v494 = vld [vmem:[%s396] sm:$0xff]
        %v495 = vld [vmem:[%s396 + $0x8] sm:$0xff]
        %v496 = vld [vmem:[%s405] sm:$0xff]
        %v497 = vld [vmem:[%s405 + $0x8] sm:$0xff]
        %v498 = vmul.f32 %v494, %v496
        %v499 = vmul.f32 %v495, %v497
        %v500 = vld [vmem:[#allocation10] sm:$0xff]
        %v501 = vld [vmem:[#allocation10 + $0x8] sm:$0xff]
        %v502 = vld [vmem:[#allocation10 + $0x10] sm:$0xff]
        %v503 = vld [vmem:[#allocation10 + $0x18] sm:$0xff]
        %v504 = vld [vmem:[#allocation10 + $0x20] sm:$0xff]
        %v505 = vld [vmem:[#allocation10 + $0x28] sm:$0xff]
        %v506 = vld [vmem:[#allocation10 + $0x30] sm:$0xff]
        %v507 = vld [vmem:[#allocation10 + $0x38] sm:$0xff]
        %v508 = vld [vmem:[#allocation10 + $0x40] sm:$0xff]
        %v509 = vld [vmem:[#allocation10 + $0x48] sm:$0xff]
        %v510 = vld [vmem:[#allocation10 + $0x50] sm:$0xff]
        %v511 = vld [vmem:[#allocation10 + $0x58] sm:$0xff]
        %v512 = vld [vmem:[#allocation10 + $0x60] sm:$0xff]
        %v513 = vld [vmem:[#allocation10 + $0x68] sm:$0xff]
        %v514 = vld [vmem:[#allocation10 + $0x70] sm:$0xff]
        %v515 = vld [vmem:[#allocation10 + $0x78] sm:$0xff]
        %v516 = vld [vmem:[#allocation10 + $0x80] sm:$0xff]
        %v517 = vld [vmem:[#allocation10 + $0x88] sm:$0xff]
        %v518 = vld [vmem:[#allocation10 + $0x90] sm:$0xff]
        %v519 = vld [vmem:[#allocation10 + $0x98] sm:$0xff]
        %v520 = vld [vmem:[#allocation10 + $0xa0] sm:$0xff]
        %v521 = vld [vmem:[#allocation10 + $0xa8] sm:$0xff]
        %v522 = vld [vmem:[#allocation10 + $0xb0] sm:$0xff]
        %v523 = vld [vmem:[#allocation10 + $0xb8] sm:$0xff]
        %v524 = vld [vmem:[#allocation10 + $0xc0] sm:$0xff]
        %v525 = vld [vmem:[#allocation10 + $0xc8] sm:$0xff]
        %v526 = vld [vmem:[#allocation10 + $0xd0] sm:$0xff]
        %v527 = vld [vmem:[#allocation10 + $0xd8] sm:$0xff]
        %v528 = vld [vmem:[#allocation10 + $0xe0] sm:$0xff]
        %v529 = vld [vmem:[#allocation10 + $0xe8] sm:$0xff]
        %v530 = vld [vmem:[#allocation10 + $0xf0] sm:$0xff]
        %v531 = vld [vmem:[#allocation10 + $0xf8] sm:$0xff]
        %v532 = vand.u32 %v501, 4294901760
        %533 = vmatprep.subr.mxu0 %v532
        %v534 = vand.u32 %v500, 4294901760
        %535 = vmatpush1.msra.mxu0 %v534
        %v536 = vand.u32 %v503, 4294901760
        %537 = vmatprep.subr.mxu0 %v536
        %v538 = vand.u32 %v502, 4294901760
        %539 = vmatpush1.msra.mxu0 %v538
        %v540 = vand.u32 %v505, 4294901760
        %541 = vmatprep.subr.mxu0 %v540
        %v542 = vand.u32 %v504, 4294901760
        %543 = vmatpush1.msra.mxu0 %v542
        %v544 = vand.u32 %v507, 4294901760
        %545 = vmatprep.subr.mxu0 %v544
        %v546 = vand.u32 %v506, 4294901760
        %547 = vmatpush1.msra.mxu0 %v546
        %v548 = vand.u32 %v509, 4294901760
        %549 = vmatprep.subr.mxu0 %v548
        %v550 = vand.u32 %v508, 4294901760
        %551 = vmatpush1.msra.mxu0 %v550
        %v552 = vand.u32 %v511, 4294901760
        %553 = vmatprep.subr.mxu0 %v552
        %v554 = vand.u32 %v510, 4294901760
        %555 = vmatpush1.msra.mxu0 %v554
        %v556 = vand.u32 %v513, 4294901760
        %557 = vmatprep.subr.mxu0 %v556
        %v558 = vand.u32 %v512, 4294901760
        %559 = vmatpush1.msra.mxu0 %v558
        %v560 = vand.u32 %v515, 4294901760
        %561 = vmatprep.subr.mxu0 %v560
        %v562 = vand.u32 %v514, 4294901760
        %563 = vmatpush1.msra.mxu0 %v562
        %v564 = vand.u32 %v517, 4294901760
        %565 = vmatprep.subr.mxu0 %v564
        %v566 = vand.u32 %v516, 4294901760
        %567 = vmatpush1.msra.mxu0 %v566
        %v568 = vand.u32 %v519, 4294901760
        %569 = vmatprep.subr.mxu0 %v568
        %v570 = vand.u32 %v518, 4294901760
        %571 = vmatpush1.msra.mxu0 %v570
        %v572 = vand.u32 %v521, 4294901760
        %573 = vmatprep.subr.mxu0 %v572
        %v574 = vand.u32 %v520, 4294901760
        %575 = vmatpush1.msra.mxu0 %v574
        %v576 = vand.u32 %v523, 4294901760
        %577 = vmatprep.subr.mxu0 %v576
        %v578 = vand.u32 %v522, 4294901760
        %579 = vmatpush1.msra.mxu0 %v578
        %v580 = vand.u32 %v525, 4294901760
        %581 = vmatprep.subr.mxu0 %v580
        %v582 = vand.u32 %v524, 4294901760
        %583 = vmatpush1.msra.mxu0 %v582
        %v584 = vand.u32 %v527, 4294901760
        %585 = vmatprep.subr.mxu0 %v584
        %v586 = vand.u32 %v526, 4294901760
        %587 = vmatpush1.msra.mxu0 %v586
        %v588 = vand.u32 %v529, 4294901760
        %589 = vmatprep.subr.mxu0 %v588
        %v590 = vand.u32 %v528, 4294901760
        %591 = vmatpush1.msra.mxu0 %v590
        %v592 = vand.u32 %v531, 4294901760
        %593 = vmatprep.subr.mxu0 %v592
        %v594 = vand.u32 %v530, 4294901760
        %595 = vmatpush1.msra.mxu0 %v594
        %596 = vmatprep.subr.mxu0 0.0
        %597 = vmatpush1.msra.mxu0 0.0
        %598 = vmatprep.subr.mxu0 0.0
        %599 = vmatpush1.msra.mxu0 0.0
        %600 = vmatprep.subr.mxu0 0.0
        %601 = vmatpush1.msra.mxu0 0.0
        %602 = vmatprep.subr.mxu0 0.0
        %603 = vmatpush1.msra.mxu0 0.0
        %604 = vmatprep.subr.mxu0 0.0
        %605 = vmatpush1.msra.mxu0 0.0
        %606 = vmatprep.subr.mxu0 0.0
        %607 = vmatpush1.msra.mxu0 0.0
        %608 = vmatprep.subr.mxu0 0.0
        %609 = vmatpush1.msra.mxu0 0.0
        %610 = vmatprep.subr.mxu0 0.0
        %611 = vmatpush1.msra.mxu0 0.0
        %612 = vmatprep.subr.mxu0 0.0
        %613 = vmatpush1.msra.mxu0 0.0
        %614 = vmatprep.subr.mxu0 0.0
        %615 = vmatpush1.msra.mxu0 0.0
        %616 = vmatprep.subr.mxu0 0.0
        %617 = vmatpush1.msra.mxu0 0.0
        %618 = vmatprep.subr.mxu0 0.0
        %619 = vmatpush1.msra.mxu0 0.0
        %620 = vmatprep.subr.mxu0 0.0
        %621 = vmatpush1.msra.mxu0 0.0
        %622 = vmatprep.subr.mxu0 0.0
        %623 = vmatpush1.msra.mxu0 0.0
        %624 = vmatprep.subr.mxu0 0.0
        %625 = vmatpush1.msra.mxu0 0.0
        %626 = vmatprep.subr.mxu0 0.0
        %627 = vmatpush1.msra.mxu0 0.0
        %628 = vmatprep.mubr.f32.mxu0 0.0
        %v629 = vand.u32 %v498, 4294901760
        %v630 = vsub.f32 %v498, %v629
        %v631 = vand.u32 %v630, 4294901760
        %v632 = vsub.f32 %v630, %v631
        %v633 = vand.u32 %v632, 4294901760
        %634 = vmatmul.mubr.f32.gmra.mrb[0].mxu0 %v633
        %v635 = vpop.f32.mrb[0].mxu0
        %v636 = vadd.f32 0.0, %v635
        %v637 = vpop.f32.mrb[0].mxu0
        %v638 = vadd.f32 0.0, %v637
        %639 = vmatprep.mubr.f32.mxu0 0.0
        %v640 = vand.u32 %v499, 4294901760
        %v641 = vsub.f32 %v499, %v640
        %v642 = vand.u32 %v641, 4294901760
        %v643 = vsub.f32 %v641, %v642
        %v644 = vand.u32 %v643, 4294901760
        %645 = vmatmul.mubr.f32.gmra.mrb[0].mxu0 %v644
        %v646 = vpop.f32.mrb[0].mxu0
        %v647 = vadd.f32 0.0, %v646
        %v648 = vpop.f32.mrb[0].mxu0
        %v649 = vadd.f32 0.0, %v648
        %650 = vdwg.mxu0
        %v651 = vand.u32 %v501, 4294901760
        %v652 = vsub.f32 %v501, %v651
        %v653 = vand.u32 %v652, 4294901760
        %v654 = vsub.f32 %v652, %v653
        %v655 = vand.u32 %v654, 4294901760
        %656 = vmatprep.subr.mxu0 %v655
        %v657 = vand.u32 %v500, 4294901760
        %v658 = vsub.f32 %v500, %v657
        %v659 = vand.u32 %v658, 4294901760
        %v660 = vsub.f32 %v658, %v659
        %v661 = vand.u32 %v660, 4294901760
        %662 = vmatpush1.msra.mxu0 %v661
        %v663 = vand.u32 %v503, 4294901760
        %v664 = vsub.f32 %v503, %v663
        %v665 = vand.u32 %v664, 4294901760
        %v666 = vsub.f32 %v664, %v665
        %v667 = vand.u32 %v666, 4294901760
        %668 = vmatprep.subr.mxu0 %v667
        %v669 = vand.u32 %v502, 4294901760
        %v670 = vsub.f32 %v502, %v669
        %v671 = vand.u32 %v670, 4294901760
        %v672 = vsub.f32 %v670, %v671
        %v673 = vand.u32 %v672, 4294901760
        %674 = vmatpush1.msra.mxu0 %v673
        %v675 = vand.u32 %v505, 4294901760
        %v676 = vsub.f32 %v505, %v675
        %v677 = vand.u32 %v676, 4294901760
        %v678 = vsub.f32 %v676, %v677
        %v679 = vand.u32 %v678, 4294901760
        %680 = vmatprep.subr.mxu0 %v679
        %v681 = vand.u32 %v504, 4294901760
        %v682 = vsub.f32 %v504, %v681
        %v683 = vand.u32 %v682, 4294901760
        %v684 = vsub.f32 %v682, %v683
        %v685 = vand.u32 %v684, 4294901760
        %686 = vmatpush1.msra.mxu0 %v685
        %v687 = vand.u32 %v507, 4294901760
        %v688 = vsub.f32 %v507, %v687
        %v689 = vand.u32 %v688, 4294901760
        %v690 = vsub.f32 %v688, %v689
        %v691 = vand.u32 %v690, 4294901760
        %692 = vmatprep.subr.mxu0 %v691
        %v693 = vand.u32 %v506, 4294901760
        %v694 = vsub.f32 %v506, %v693
        %v695 = vand.u32 %v694, 4294901760
        %v696 = vsub.f32 %v694, %v695
        %v697 = vand.u32 %v696, 4294901760
        %698 = vmatpush1.msra.mxu0 %v697
        %v699 = vand.u32 %v509, 4294901760
        %v700 = vsub.f32 %v509, %v699
        %v701 = vand.u32 %v700, 4294901760
        %v702 = vsub.f32 %v700, %v701
        %v703 = vand.u32 %v702, 4294901760
        %704 = vmatprep.subr.mxu0 %v703
        %v705 = vand.u32 %v508, 4294901760
        %v706 = vsub.f32 %v508, %v705
        %v707 = vand.u32 %v706, 4294901760
        %v708 = vsub.f32 %v706, %v707
        %v709 = vand.u32 %v708, 4294901760
        %710 = vmatpush1.msra.mxu0 %v709
        %v711 = vand.u32 %v511, 4294901760
        %v712 = vsub.f32 %v511, %v711
        %v713 = vand.u32 %v712, 4294901760
        %v714 = vsub.f32 %v712, %v713
        %v715 = vand.u32 %v714, 4294901760
        %716 = vmatprep.subr.mxu0 %v715
        %v717 = vand.u32 %v510, 4294901760
        %v718 = vsub.f32 %v510, %v717
        %v719 = vand.u32 %v718, 4294901760
        %v720 = vsub.f32 %v718, %v719
        %v721 = vand.u32 %v720, 4294901760
        %722 = vmatpush1.msra.mxu0 %v721
        %v723 = vand.u32 %v513, 4294901760
        %v724 = vsub.f32 %v513, %v723
        %v725 = vand.u32 %v724, 4294901760
        %v726 = vsub.f32 %v724, %v725
        %v727 = vand.u32 %v726, 4294901760
        %728 = vmatprep.subr.mxu0 %v727
        %v729 = vand.u32 %v512, 4294901760
        %v730 = vsub.f32 %v512, %v729
        %v731 = vand.u32 %v730, 4294901760
        %v732 = vsub.f32 %v730, %v731
        %v733 = vand.u32 %v732, 4294901760
        %734 = vmatpush1.msra.mxu0 %v733
        %v735 = vand.u32 %v515, 4294901760
        %v736 = vsub.f32 %v515, %v735
        %v737 = vand.u32 %v736, 4294901760
        %v738 = vsub.f32 %v736, %v737
        %v739 = vand.u32 %v738, 4294901760
        %740 = vmatprep.subr.mxu0 %v739
        %v741 = vand.u32 %v514, 4294901760
        %v742 = vsub.f32 %v514, %v741
        %v743 = vand.u32 %v742, 4294901760
        %v744 = vsub.f32 %v742, %v743
        %v745 = vand.u32 %v744, 4294901760
        %746 = vmatpush1.msra.mxu0 %v745
        %v747 = vand.u32 %v517, 4294901760
        %v748 = vsub.f32 %v517, %v747
        %v749 = vand.u32 %v748, 4294901760
        %v750 = vsub.f32 %v748, %v749
        %v751 = vand.u32 %v750, 4294901760
        %752 = vmatprep.subr.mxu0 %v751
        %v753 = vand.u32 %v516, 4294901760
        %v754 = vsub.f32 %v516, %v753
        %v755 = vand.u32 %v754, 4294901760
        %v756 = vsub.f32 %v754, %v755
        %v757 = vand.u32 %v756, 4294901760
        %758 = vmatpush1.msra.mxu0 %v757
        %v759 = vand.u32 %v519, 4294901760
        %v760 = vsub.f32 %v519, %v759
        %v761 = vand.u32 %v760, 4294901760
        %v762 = vsub.f32 %v760, %v761
        %v763 = vand.u32 %v762, 4294901760
        %764 = vmatprep.subr.mxu0 %v763
        %v765 = vand.u32 %v518, 4294901760
        %v766 = vsub.f32 %v518, %v765
        %v767 = vand.u32 %v766, 4294901760
        %v768 = vsub.f32 %v766, %v767
        %v769 = vand.u32 %v768, 4294901760
        %770 = vmatpush1.msra.mxu0 %v769
        %v771 = vand.u32 %v521, 4294901760
        %v772 = vsub.f32 %v521, %v771
        %v773 = vand.u32 %v772, 4294901760
        %v774 = vsub.f32 %v772, %v773
        %v775 = vand.u32 %v774, 4294901760
        %776 = vmatprep.subr.mxu0 %v775
        %v777 = vand.u32 %v520, 4294901760
        %v778 = vsub.f32 %v520, %v777
        %v779 = vand.u32 %v778, 4294901760
        %v780 = vsub.f32 %v778, %v779
        %v781 = vand.u32 %v780, 4294901760
        %782 = vmatpush1.msra.mxu0 %v781
        %v783 = vand.u32 %v523, 4294901760
        %v784 = vsub.f32 %v523, %v783
        %v785 = vand.u32 %v784, 4294901760
        %v786 = vsub.f32 %v784, %v785
        %v787 = vand.u32 %v786, 4294901760
        %788 = vmatprep.subr.mxu0 %v787
        %v789 = vand.u32 %v522, 4294901760
        %v790 = vsub.f32 %v522, %v789
        %v791 = vand.u32 %v790, 4294901760
        %v792 = vsub.f32 %v790, %v791
        %v793 = vand.u32 %v792, 4294901760
        %794 = vmatpush1.msra.mxu0 %v793
        %v795 = vand.u32 %v525, 4294901760
        %v796 = vsub.f32 %v525, %v795
        %v797 = vand.u32 %v796, 4294901760
        %v798 = vsub.f32 %v796, %v797
        %v799 = vand.u32 %v798, 4294901760
        %800 = vmatprep.subr.mxu0 %v799
        %v801 = vand.u32 %v524, 4294901760
        %v802 = vsub.f32 %v524, %v801
        %v803 = vand.u32 %v802, 4294901760
        %v804 = vsub.f32 %v802, %v803
        %v805 = vand.u32 %v804, 4294901760
        %806 = vmatpush1.msra.mxu0 %v805
        %v807 = vand.u32 %v527, 4294901760
        %v808 = vsub.f32 %v527, %v807
        %v809 = vand.u32 %v808, 4294901760
        %v810 = vsub.f32 %v808, %v809
        %v811 = vand.u32 %v810, 4294901760
        %812 = vmatprep.subr.mxu0 %v811
        %v813 = vand.u32 %v526, 4294901760
        %v814 = vsub.f32 %v526, %v813
        %v815 = vand.u32 %v814, 4294901760
        %v816 = vsub.f32 %v814, %v815
        %v817 = vand.u32 %v816, 4294901760
        %818 = vmatpush1.msra.mxu0 %v817
        %v819 = vand.u32 %v529, 4294901760
        %v820 = vsub.f32 %v529, %v819
        %v821 = vand.u32 %v820, 4294901760
        %v822 = vsub.f32 %v820, %v821
        %v823 = vand.u32 %v822, 4294901760
        %824 = vmatprep.subr.mxu0 %v823
        %v825 = vand.u32 %v528, 4294901760
        %v826 = vsub.f32 %v528, %v825
        %v827 = vand.u32 %v826, 4294901760
        %v828 = vsub.f32 %v826, %v827
        %v829 = vand.u32 %v828, 4294901760
        %830 = vmatpush1.msra.mxu0 %v829
        %v831 = vand.u32 %v531, 4294901760
        %v832 = vsub.f32 %v531, %v831
        %v833 = vand.u32 %v832, 4294901760
        %v834 = vsub.f32 %v832, %v833
        %v835 = vand.u32 %v834, 4294901760
        %836 = vmatprep.subr.mxu0 %v835
        %v837 = vand.u32 %v530, 4294901760
        %v838 = vsub.f32 %v530, %v837
        %v839 = vand.u32 %v838, 4294901760
        %v840 = vsub.f32 %v838, %v839
        %v841 = vand.u32 %v840, 4294901760
        %842 = vmatpush1.msra.mxu0 %v841
        %843 = vmatprep.subr.mxu0 0.0
        %844 = vmatpush1.msra.mxu0 0.0
        %845 = vmatprep.subr.mxu0 0.0
        %846 = vmatpush1.msra.mxu0 0.0
        %847 = vmatprep.subr.mxu0 0.0
        %848 = vmatpush1.msra.mxu0 0.0
        %849 = vmatprep.subr.mxu0 0.0
        %850 = vmatpush1.msra.mxu0 0.0
        %851 = vmatprep.subr.mxu0 0.0
        %852 = vmatpush1.msra.mxu0 0.0
        %853 = vmatprep.subr.mxu0 0.0
        %854 = vmatpush1.msra.mxu0 0.0
        %855 = vmatprep.subr.mxu0 0.0
        %856 = vmatpush1.msra.mxu0 0.0
        %857 = vmatprep.subr.mxu0 0.0
        %858 = vmatpush1.msra.mxu0 0.0
        %859 = vmatprep.subr.mxu0 0.0
        %860 = vmatpush1.msra.mxu0 0.0
        %861 = vmatprep.subr.mxu0 0.0
        %862 = vmatpush1.msra.mxu0 0.0
        %863 = vmatprep.subr.mxu0 0.0
        %864 = vmatpush1.msra.mxu0 0.0
        %865 = vmatprep.subr.mxu0 0.0
        %866 = vmatpush1.msra.mxu0 0.0
        %867 = vmatprep.subr.mxu0 0.0
        %868 = vmatpush1.msra.mxu0 0.0
        %869 = vmatprep.subr.mxu0 0.0
        %870 = vmatpush1.msra.mxu0 0.0
        %871 = vmatprep.subr.mxu0 0.0
        %872 = vmatpush1.msra.mxu0 0.0
        %873 = vmatprep.subr.mxu0 0.0
        %874 = vmatpush1.msra.mxu0 0.0
        %875 = vmatprep.mubr.f32.mxu0 0.0
        %v876 = vand.u32 %v498, 4294901760
        %877 = vmatmul.mubr.f32.gmra.mrb[0].mxu0 %v876
        %v878 = vpop.f32.mrb[0].mxu0
        %v879 = vadd.f32 %v636, %v878
        %v880 = vpop.f32.mrb[0].mxu0
        %v881 = vadd.f32 %v638, %v880
        %882 = vmatprep.mubr.f32.mxu0 0.0
        %v883 = vand.u32 %v499, 4294901760
        %884 = vmatmul.mubr.f32.gmra.mrb[0].mxu0 %v883
        %v885 = vpop.f32.mrb[0].mxu0
        %v886 = vadd.f32 %v647, %v885
        %v887 = vpop.f32.mrb[0].mxu0
        %v888 = vadd.f32 %v649, %v887
        %889 = vdwg.mxu0
        %v890 = vand.u32 %v501, 4294901760
        %v891 = vsub.f32 %v501, %v890
        %892 = vmatprep.subr.mxu0 %v891
        %v893 = vand.u32 %v500, 4294901760
        %v894 = vsub.f32 %v500, %v893
        %895 = vmatpush1.msra.mxu0 %v894
        %v896 = vand.u32 %v503, 4294901760
        %v897 = vsub.f32 %v503, %v896
        %898 = vmatprep.subr.mxu0 %v897
        %v899 = vand.u32 %v502, 4294901760
        %v900 = vsub.f32 %v502, %v899
        %901 = vmatpush1.msra.mxu0 %v900
        %v902 = vand.u32 %v505, 4294901760
        %v903 = vsub.f32 %v505, %v902
        %904 = vmatprep.subr.mxu0 %v903
        %v905 = vand.u32 %v504, 4294901760
        %v906 = vsub.f32 %v504, %v905
        %907 = vmatpush1.msra.mxu0 %v906
        %v908 = vand.u32 %v507, 4294901760
        %v909 = vsub.f32 %v507, %v908
        %910 = vmatprep.subr.mxu0 %v909
        %v911 = vand.u32 %v506, 4294901760
        %v912 = vsub.f32 %v506, %v911
        %913 = vmatpush1.msra.mxu0 %v912
        %v914 = vand.u32 %v509, 4294901760
        %v915 = vsub.f32 %v509, %v914
        %916 = vmatprep.subr.mxu0 %v915
        %v917 = vand.u32 %v508, 4294901760
        %v918 = vsub.f32 %v508, %v917
        %919 = vmatpush1.msra.mxu0 %v918
        %v920 = vand.u32 %v511, 4294901760
        %v921 = vsub.f32 %v511, %v920
        %922 = vmatprep.subr.mxu0 %v921
        %v923 = vand.u32 %v510, 4294901760
        %v924 = vsub.f32 %v510, %v923
        %925 = vmatpush1.msra.mxu0 %v924
        %v926 = vand.u32 %v513, 4294901760
        %v927 = vsub.f32 %v513, %v926
        %928 = vmatprep.subr.mxu0 %v927
        %v929 = vand.u32 %v512, 4294901760
        %v930 = vsub.f32 %v512, %v929
        %931 = vmatpush1.msra.mxu0 %v930
        %v932 = vand.u32 %v515, 4294901760
        %v933 = vsub.f32 %v515, %v932
        %934 = vmatprep.subr.mxu0 %v933
        %v935 = vand.u32 %v514, 4294901760
        %v936 = vsub.f32 %v514, %v935
        %937 = vmatpush1.msra.mxu0 %v936
        %v938 = vand.u32 %v517, 4294901760
        %v939 = vsub.f32 %v517, %v938
        %940 = vmatprep.subr.mxu0 %v939
        %v941 = vand.u32 %v516, 4294901760
        %v942 = vsub.f32 %v516, %v941
        %943 = vmatpush1.msra.mxu0 %v942
        %v944 = vand.u32 %v519, 4294901760
        %v945 = vsub.f32 %v519, %v944
        %946 = vmatprep.subr.mxu0 %v945
        %v947 = vand.u32 %v518, 4294901760
        %v948 = vsub.f32 %v518, %v947
        %949 = vmatpush1.msra.mxu0 %v948
        %v950 = vand.u32 %v521, 4294901760
        %v951 = vsub.f32 %v521, %v950
        %952 = vmatprep.subr.mxu0 %v951
        %v953 = vand.u32 %v520, 4294901760
        %v954 = vsub.f32 %v520, %v953
        %955 = vmatpush1.msra.mxu0 %v954
        %v956 = vand.u32 %v523, 4294901760
        %v957 = vsub.f32 %v523, %v956
        %958 = vmatprep.subr.mxu0 %v957
        %v959 = vand.u32 %v522, 4294901760
        %v960 = vsub.f32 %v522, %v959
        %961 = vmatpush1.msra.mxu0 %v960
        %v962 = vand.u32 %v525, 4294901760
        %v963 = vsub.f32 %v525, %v962
        %964 = vmatprep.subr.mxu0 %v963
        %v965 = vand.u32 %v524, 4294901760
        %v966 = vsub.f32 %v524, %v965
        %967 = vmatpush1.msra.mxu0 %v966
        %v968 = vand.u32 %v527, 4294901760
        %v969 = vsub.f32 %v527, %v968
        %970 = vmatprep.subr.mxu0 %v969
        %v971 = vand.u32 %v526, 4294901760
        %v972 = vsub.f32 %v526, %v971
        %973 = vmatpush1.msra.mxu0 %v972
        %v974 = vand.u32 %v529, 4294901760
        %v975 = vsub.f32 %v529, %v974
        %976 = vmatprep.subr.mxu0 %v975
        %v977 = vand.u32 %v528, 4294901760
        %v978 = vsub.f32 %v528, %v977
        %979 = vmatpush1.msra.mxu0 %v978
        %v980 = vand.u32 %v531, 4294901760
        %v981 = vsub.f32 %v531, %v980
        %982 = vmatprep.subr.mxu0 %v981
        %v983 = vand.u32 %v530, 4294901760
        %v984 = vsub.f32 %v530, %v983
        %985 = vmatpush1.msra.mxu0 %v984
        %986 = vmatprep.subr.mxu0 0.0
        %987 = vmatpush1.msra.mxu0 0.0
        %988 = vmatprep.subr.mxu0 0.0
        %989 = vmatpush1.msra.mxu0 0.0
        %990 = vmatprep.subr.mxu0 0.0
        %991 = vmatpush1.msra.mxu0 0.0
        %992 = vmatprep.subr.mxu0 0.0
        %993 = vmatpush1.msra.mxu0 0.0
        %994 = vmatprep.subr.mxu0 0.0
        %995 = vmatpush1.msra.mxu0 0.0
        %996 = vmatprep.subr.mxu0 0.0
        %997 = vmatpush1.msra.mxu0 0.0
        %998 = vmatprep.subr.mxu0 0.0
        %999 = vmatpush1.msra.mxu0 0.0
        %1000 = vmatprep.subr.mxu0 0.0
        %1001 = vmatpush1.msra.mxu0 0.0
        %1002 = vmatprep.subr.mxu0 0.0
        %1003 = vmatpush1.msra.mxu0 0.0
        %1004 = vmatprep.subr.mxu0 0.0
        %1005 = vmatpush1.msra.mxu0 0.0
        %1006 = vmatprep.subr.mxu0 0.0
        %1007 = vmatpush1.msra.mxu0 0.0
        %1008 = vmatprep.subr.mxu0 0.0
        %1009 = vmatpush1.msra.mxu0 0.0
        %1010 = vmatprep.subr.mxu0 0.0
        %1011 = vmatpush1.msra.mxu0 0.0
        %1012 = vmatprep.subr.mxu0 0.0
        %1013 = vmatpush1.msra.mxu0 0.0
        %1014 = vmatprep.subr.mxu0 0.0
        %1015 = vmatpush1.msra.mxu0 0.0
        %1016 = vmatprep.subr.mxu0 0.0
        %1017 = vmatpush1.msra.mxu0 0.0
        %1018 = vmatprep.mubr.f32.mxu0 0.0
        %v1019 = vand.u32 %v498, 4294901760
        %v1020 = vsub.f32 %v498, %v1019
        %1021 = vmatmul.mubr.f32.gmra.mrb[0].mxu0 %v1020
        %v1022 = vpop.f32.mrb[0].mxu0
        %v1023 = vadd.f32 %v879, %v1022
        %v1024 = vpop.f32.mrb[0].mxu0
        %v1025 = vadd.f32 %v881, %v1024
        %1026 = vmatprep.mubr.f32.mxu0 0.0
        %v1027 = vand.u32 %v499, 4294901760
        %v1028 = vsub.f32 %v499, %v1027
        %1029 = vmatmul.mubr.f32.gmra.mrb[0].mxu0 %v1028
        %v1030 = vpop.f32.mrb[0].mxu0
        %v1031 = vadd.f32 %v886, %v1030
        %v1032 = vpop.f32.mrb[0].mxu0
        %v1033 = vadd.f32 %v888, %v1032
        %1034 = vdwg.mxu0
        %v1035 = vand.u32 %v501, 4294901760
        %1036 = vmatprep.subr.mxu0 %v1035
        %v1037 = vand.u32 %v500, 4294901760
        %1038 = vmatpush1.msra.mxu0 %v1037
        %v1039 = vand.u32 %v503, 4294901760
        %1040 = vmatprep.subr.mxu0 %v1039
        %v1041 = vand.u32 %v502, 4294901760
        %1042 = vmatpush1.msra.mxu0 %v1041
        %v1043 = vand.u32 %v505, 4294901760
        %1044 = vmatprep.subr.mxu0 %v1043
        %v1045 = vand.u32 %v504, 4294901760
        %1046 = vmatpush1.msra.mxu0 %v1045
        %v1047 = vand.u32 %v507, 4294901760
        %1048 = vmatprep.subr.mxu0 %v1047
        %v1049 = vand.u32 %v506, 4294901760
        %1050 = vmatpush1.msra.mxu0 %v1049
        %v1051 = vand.u32 %v509, 4294901760
        %1052 = vmatprep.subr.mxu0 %v1051
        %v1053 = vand.u32 %v508, 4294901760
        %1054 = vmatpush1.msra.mxu0 %v1053
        %v1055 = vand.u32 %v511, 4294901760
        %1056 = vmatprep.subr.mxu0 %v1055
        %v1057 = vand.u32 %v510, 4294901760
        %1058 = vmatpush1.msra.mxu0 %v1057
        %v1059 = vand.u32 %v513, 4294901760
        %1060 = vmatprep.subr.mxu0 %v1059
        %v1061 = vand.u32 %v512, 4294901760
        %1062 = vmatpush1.msra.mxu0 %v1061
        %v1063 = vand.u32 %v515, 4294901760
        %1064 = vmatprep.subr.mxu0 %v1063
        %v1065 = vand.u32 %v514, 4294901760
        %1066 = vmatpush1.msra.mxu0 %v1065
        %v1067 = vand.u32 %v517, 4294901760
        %1068 = vmatprep.subr.mxu0 %v1067
        %v1069 = vand.u32 %v516, 4294901760
        %1070 = vmatpush1.msra.mxu0 %v1069
        %v1071 = vand.u32 %v519, 4294901760
        %1072 = vmatprep.subr.mxu0 %v1071
        %v1073 = vand.u32 %v518, 4294901760
        %1074 = vmatpush1.msra.mxu0 %v1073
        %v1075 = vand.u32 %v521, 4294901760
        %1076 = vmatprep.subr.mxu0 %v1075
        %v1077 = vand.u32 %v520, 4294901760
        %1078 = vmatpush1.msra.mxu0 %v1077
        %v1079 = vand.u32 %v523, 4294901760
        %1080 = vmatprep.subr.mxu0 %v1079
        %v1081 = vand.u32 %v522, 4294901760
        %1082 = vmatpush1.msra.mxu0 %v1081
        %v1083 = vand.u32 %v525, 4294901760
        %1084 = vmatprep.subr.mxu0 %v1083
        %v1085 = vand.u32 %v524, 4294901760
        %1086 = vmatpush1.msra.mxu0 %v1085
        %v1087 = vand.u32 %v527, 4294901760
        %1088 = vmatprep.subr.mxu0 %v1087
        %v1089 = vand.u32 %v526, 4294901760
        %1090 = vmatpush1.msra.mxu0 %v1089
        %v1091 = vand.u32 %v529, 4294901760
        %1092 = vmatprep.subr.mxu0 %v1091
        %v1093 = vand.u32 %v528, 4294901760
        %1094 = vmatpush1.msra.mxu0 %v1093
        %v1095 = vand.u32 %v531, 4294901760
        %1096 = vmatprep.subr.mxu0 %v1095
        %v1097 = vand.u32 %v530, 4294901760
        %1098 = vmatpush1.msra.mxu0 %v1097
        %1099 = vmatprep.subr.mxu0 0.0
        %1100 = vmatpush1.msra.mxu0 0.0
        %1101 = vmatprep.subr.mxu0 0.0
        %1102 = vmatpush1.msra.mxu0 0.0
        %1103 = vmatprep.subr.mxu0 0.0
        %1104 = vmatpush1.msra.mxu0 0.0
        %1105 = vmatprep.subr.mxu0 0.0
        %1106 = vmatpush1.msra.mxu0 0.0
        %1107 = vmatprep.subr.mxu0 0.0
        %1108 = vmatpush1.msra.mxu0 0.0
        %1109 = vmatprep.subr.mxu0 0.0
        %1110 = vmatpush1.msra.mxu0 0.0
        %1111 = vmatprep.subr.mxu0 0.0
        %1112 = vmatpush1.msra.mxu0 0.0
        %1113 = vmatprep.subr.mxu0 0.0
        %1114 = vmatpush1.msra.mxu0 0.0
        %1115 = vmatprep.subr.mxu0 0.0
        %1116 = vmatpush1.msra.mxu0 0.0
        %1117 = vmatprep.subr.mxu0 0.0
        %1118 = vmatpush1.msra.mxu0 0.0
        %1119 = vmatprep.subr.mxu0 0.0
        %1120 = vmatpush1.msra.mxu0 0.0
        %1121 = vmatprep.subr.mxu0 0.0
        %1122 = vmatpush1.msra.mxu0 0.0
        %1123 = vmatprep.subr.mxu0 0.0
        %1124 = vmatpush1.msra.mxu0 0.0
        %1125 = vmatprep.subr.mxu0 0.0
        %1126 = vmatpush1.msra.mxu0 0.0
        %1127 = vmatprep.subr.mxu0 0.0
        %1128 = vmatpush1.msra.mxu0 0.0
        %1129 = vmatprep.subr.mxu0 0.0
        %1130 = vmatpush1.msra.mxu0 0.0
        %1131 = vmatprep.mubr.f32.mxu0 0.0
        %v1132 = vand.u32 %v498, 4294901760
        %v1133 = vsub.f32 %v498, %v1132
        %v1134 = vand.u32 %v1133, 4294901760
        %1135 = vmatmul.mubr.f32.gmra.mrb[0].mxu0 %v1134
        %v1136 = vpop.f32.mrb[0].mxu0
        %v1137 = vadd.f32 %v1023, %v1136
        %v1138 = vpop.f32.mrb[0].mxu0
        %v1139 = vadd.f32 %v1025, %v1138
        %1140 = vmatprep.mubr.f32.mxu0 0.0
        %v1141 = vand.u32 %v499, 4294901760
        %v1142 = vsub.f32 %v499, %v1141
        %v1143 = vand.u32 %v1142, 4294901760
        %1144 = vmatmul.mubr.f32.gmra.mrb[0].mxu0 %v1143
        %v1145 = vpop.f32.mrb[0].mxu0
        %v1146 = vadd.f32 %v1031, %v1145
        %v1147 = vpop.f32.mrb[0].mxu0
        %v1148 = vadd.f32 %v1033, %v1147
        %1149 = vdwg.mxu0
        %v1150 = vand.u32 %v501, 4294901760
        %v1151 = vsub.f32 %v501, %v1150
        %v1152 = vand.u32 %v1151, 4294901760
        %1153 = vmatprep.subr.mxu0 %v1152
        %v1154 = vand.u32 %v500, 4294901760
        %v1155 = vsub.f32 %v500, %v1154
        %v1156 = vand.u32 %v1155, 4294901760
        %1157 = vmatpush1.msra.mxu0 %v1156
        %v1158 = vand.u32 %v503, 4294901760
        %v1159 = vsub.f32 %v503, %v1158
        %v1160 = vand.u32 %v1159, 4294901760
        %1161 = vmatprep.subr.mxu0 %v1160
        %v1162 = vand.u32 %v502, 4294901760
        %v1163 = vsub.f32 %v502, %v1162
        %v1164 = vand.u32 %v1163, 4294901760
        %1165 = vmatpush1.msra.mxu0 %v1164
        %v1166 = vand.u32 %v505, 4294901760
        %v1167 = vsub.f32 %v505, %v1166
        %v1168 = vand.u32 %v1167, 4294901760
        %1169 = vmatprep.subr.mxu0 %v1168
        %v1170 = vand.u32 %v504, 4294901760
        %v1171 = vsub.f32 %v504, %v1170
        %v1172 = vand.u32 %v1171, 4294901760
        %1173 = vmatpush1.msra.mxu0 %v1172
        %v1174 = vand.u32 %v507, 4294901760
        %v1175 = vsub.f32 %v507, %v1174
        %v1176 = vand.u32 %v1175, 4294901760
        %1177 = vmatprep.subr.mxu0 %v1176
        %v1178 = vand.u32 %v506, 4294901760
        %v1179 = vsub.f32 %v506, %v1178
        %v1180 = vand.u32 %v1179, 4294901760
        %1181 = vmatpush1.msra.mxu0 %v1180
        %v1182 = vand.u32 %v509, 4294901760
        %v1183 = vsub.f32 %v509, %v1182
        %v1184 = vand.u32 %v1183, 4294901760
        %1185 = vmatprep.subr.mxu0 %v1184
        %v1186 = vand.u32 %v508, 4294901760
        %v1187 = vsub.f32 %v508, %v1186
        %v1188 = vand.u32 %v1187, 4294901760
        %1189 = vmatpush1.msra.mxu0 %v1188
        %v1190 = vand.u32 %v511, 4294901760
        %v1191 = vsub.f32 %v511, %v1190
        %v1192 = vand.u32 %v1191, 4294901760
        %1193 = vmatprep.subr.mxu0 %v1192
        %v1194 = vand.u32 %v510, 4294901760
        %v1195 = vsub.f32 %v510, %v1194
        %v1196 = vand.u32 %v1195, 4294901760
        %1197 = vmatpush1.msra.mxu0 %v1196
        %v1198 = vand.u32 %v513, 4294901760
        %v1199 = vsub.f32 %v513, %v1198
        %v1200 = vand.u32 %v1199, 4294901760
        %1201 = vmatprep.subr.mxu0 %v1200
        %v1202 = vand.u32 %v512, 4294901760
        %v1203 = vsub.f32 %v512, %v1202
        %v1204 = vand.u32 %v1203, 4294901760
        %1205 = vmatpush1.msra.mxu0 %v1204
        %v1206 = vand.u32 %v515, 4294901760
        %v1207 = vsub.f32 %v515, %v1206
        %v1208 = vand.u32 %v1207, 4294901760
        %1209 = vmatprep.subr.mxu0 %v1208
        %v1210 = vand.u32 %v514, 4294901760
        %v1211 = vsub.f32 %v514, %v1210
        %v1212 = vand.u32 %v1211, 4294901760
        %1213 = vmatpush1.msra.mxu0 %v1212
        %v1214 = vand.u32 %v517, 4294901760
        %v1215 = vsub.f32 %v517, %v1214
        %v1216 = vand.u32 %v1215, 4294901760
        %1217 = vmatprep.subr.mxu0 %v1216
        %v1218 = vand.u32 %v516, 4294901760
        %v1219 = vsub.f32 %v516, %v1218
        %v1220 = vand.u32 %v1219, 4294901760
        %1221 = vmatpush1.msra.mxu0 %v1220
        %v1222 = vand.u32 %v519, 4294901760
        %v1223 = vsub.f32 %v519, %v1222
        %v1224 = vand.u32 %v1223, 4294901760
        %1225 = vmatprep.subr.mxu0 %v1224
        %v1226 = vand.u32 %v518, 4294901760
        %v1227 = vsub.f32 %v518, %v1226
        %v1228 = vand.u32 %v1227, 4294901760
        %1229 = vmatpush1.msra.mxu0 %v1228
        %v1230 = vand.u32 %v521, 4294901760
        %v1231 = vsub.f32 %v521, %v1230
        %v1232 = vand.u32 %v1231, 4294901760
        %1233 = vmatprep.subr.mxu0 %v1232
        %v1234 = vand.u32 %v520, 4294901760
        %v1235 = vsub.f32 %v520, %v1234
        %v1236 = vand.u32 %v1235, 4294901760
        %1237 = vmatpush1.msra.mxu0 %v1236
        %v1238 = vand.u32 %v523, 4294901760
        %v1239 = vsub.f32 %v523, %v1238
        %v1240 = vand.u32 %v1239, 4294901760
        %1241 = vmatprep.subr.mxu0 %v1240
        %v1242 = vand.u32 %v522, 4294901760
        %v1243 = vsub.f32 %v522, %v1242
        %v1244 = vand.u32 %v1243, 4294901760
        %1245 = vmatpush1.msra.mxu0 %v1244
        %v1246 = vand.u32 %v525, 4294901760
        %v1247 = vsub.f32 %v525, %v1246
        %v1248 = vand.u32 %v1247, 4294901760
        %1249 = vmatprep.subr.mxu0 %v1248
        %v1250 = vand.u32 %v524, 4294901760
        %v1251 = vsub.f32 %v524, %v1250
        %v1252 = vand.u32 %v1251, 4294901760
        %1253 = vmatpush1.msra.mxu0 %v1252
        %v1254 = vand.u32 %v527, 4294901760
        %v1255 = vsub.f32 %v527, %v1254
        %v1256 = vand.u32 %v1255, 4294901760
        %1257 = vmatprep.subr.mxu0 %v1256
        %v1258 = vand.u32 %v526, 4294901760
        %v1259 = vsub.f32 %v526, %v1258
        %v1260 = vand.u32 %v1259, 4294901760
        %1261 = vmatpush1.msra.mxu0 %v1260
        %v1262 = vand.u32 %v529, 4294901760
        %v1263 = vsub.f32 %v529, %v1262
        %v1264 = vand.u32 %v1263, 4294901760
        %1265 = vmatprep.subr.mxu0 %v1264
        %v1266 = vand.u32 %v528, 4294901760
        %v1267 = vsub.f32 %v528, %v1266
        %v1268 = vand.u32 %v1267, 4294901760
        %1269 = vmatpush1.msra.mxu0 %v1268
        %v1270 = vand.u32 %v531, 4294901760
        %v1271 = vsub.f32 %v531, %v1270
        %v1272 = vand.u32 %v1271, 4294901760
        %1273 = vmatprep.subr.mxu0 %v1272
        %v1274 = vand.u32 %v530, 4294901760
        %v1275 = vsub.f32 %v530, %v1274
        %v1276 = vand.u32 %v1275, 4294901760
        %1277 = vmatpush1.msra.mxu0 %v1276
        %1278 = vmatprep.subr.mxu0 0.0
        %1279 = vmatpush1.msra.mxu0 0.0
        %1280 = vmatprep.subr.mxu0 0.0
        %1281 = vmatpush1.msra.mxu0 0.0
        %1282 = vmatprep.subr.mxu0 0.0
        %1283 = vmatpush1.msra.mxu0 0.0
        %1284 = vmatprep.subr.mxu0 0.0
        %1285 = vmatpush1.msra.mxu0 0.0
        %1286 = vmatprep.subr.mxu0 0.0
        %1287 = vmatpush1.msra.mxu0 0.0
        %1288 = vmatprep.subr.mxu0 0.0
        %1289 = vmatpush1.msra.mxu0 0.0
        %1290 = vmatprep.subr.mxu0 0.0
        %1291 = vmatpush1.msra.mxu0 0.0
        %1292 = vmatprep.subr.mxu0 0.0
        %1293 = vmatpush1.msra.mxu0 0.0
        %1294 = vmatprep.subr.mxu0 0.0
        %1295 = vmatpush1.msra.mxu0 0.0
        %1296 = vmatprep.subr.mxu0 0.0
        %1297 = vmatpush1.msra.mxu0 0.0
        %1298 = vmatprep.subr.mxu0 0.0
        %1299 = vmatpush1.msra.mxu0 0.0
        %1300 = vmatprep.subr.mxu0 0.0
        %1301 = vmatpush1.msra.mxu0 0.0
        %1302 = vmatprep.subr.mxu0 0.0
        %1303 = vmatpush1.msra.mxu0 0.0
        %1304 = vmatprep.subr.mxu0 0.0
        %1305 = vmatpush1.msra.mxu0 0.0
        %1306 = vmatprep.subr.mxu0 0.0
        %1307 = vmatpush1.msra.mxu0 0.0
        %1308 = vmatprep.subr.mxu0 0.0
        %1309 = vmatpush1.msra.mxu0 0.0
        %1310 = vmatprep.mubr.f32.mxu0 0.0
        %v1311 = vand.u32 %v498, 4294901760
        %1312 = vmatmul.mubr.f32.gmra.mrb[0].mxu0 %v1311
        %v1313 = vpop.f32.mrb[0].mxu0
        %v1314 = vadd.f32 %v1137, %v1313
        %v1315 = vpop.f32.mrb[0].mxu0
        %v1316 = vadd.f32 %v1139, %v1315
        %1317 = vmatprep.mubr.f32.mxu0 0.0
        %v1318 = vand.u32 %v499, 4294901760
        %1319 = vmatmul.mubr.f32.gmra.mrb[0].mxu0 %v1318
        %v1320 = vpop.f32.mrb[0].mxu0
        %v1321 = vadd.f32 %v1146, %v1320
        %v1322 = vpop.f32.mrb[0].mxu0
        %v1323 = vadd.f32 %v1148, %v1322
        %1324 = vdwg.mxu0
        %v1325 = vand.u32 %v501, 4294901760
        %1326 = vmatprep.subr.mxu0 %v1325
        %v1327 = vand.u32 %v500, 4294901760
        %1328 = vmatpush1.msra.mxu0 %v1327
        %v1329 = vand.u32 %v503, 4294901760
        %1330 = vmatprep.subr.mxu0 %v1329
        %v1331 = vand.u32 %v502, 4294901760
        %1332 = vmatpush1.msra.mxu0 %v1331
        %v1333 = vand.u32 %v505, 4294901760
        %1334 = vmatprep.subr.mxu0 %v1333
        %v1335 = vand.u32 %v504, 4294901760
        %1336 = vmatpush1.msra.mxu0 %v1335
        %v1337 = vand.u32 %v507, 4294901760
        %1338 = vmatprep.subr.mxu0 %v1337
        %v1339 = vand.u32 %v506, 4294901760
        %1340 = vmatpush1.msra.mxu0 %v1339
        %v1341 = vand.u32 %v509, 4294901760
        %1342 = vmatprep.subr.mxu0 %v1341
        %v1343 = vand.u32 %v508, 4294901760
        %1344 = vmatpush1.msra.mxu0 %v1343
        %v1345 = vand.u32 %v511, 4294901760
        %1346 = vmatprep.subr.mxu0 %v1345
        %v1347 = vand.u32 %v510, 4294901760
        %1348 = vmatpush1.msra.mxu0 %v1347
        %v1349 = vand.u32 %v513, 4294901760
        %1350 = vmatprep.subr.mxu0 %v1349
        %v1351 = vand.u32 %v512, 4294901760
        %1352 = vmatpush1.msra.mxu0 %v1351
        %v1353 = vand.u32 %v515, 4294901760
        %1354 = vmatprep.subr.mxu0 %v1353
        %v1355 = vand.u32 %v514, 4294901760
        %1356 = vmatpush1.msra.mxu0 %v1355
        %v1357 = vand.u32 %v517, 4294901760
        %1358 = vmatprep.subr.mxu0 %v1357
        %v1359 = vand.u32 %v516, 4294901760
        %1360 = vmatpush1.msra.mxu0 %v1359
        %v1361 = vand.u32 %v519, 4294901760
        %1362 = vmatprep.subr.mxu0 %v1361
        %v1363 = vand.u32 %v518, 4294901760
        %1364 = vmatpush1.msra.mxu0 %v1363
        %v1365 = vand.u32 %v521, 4294901760
        %1366 = vmatprep.subr.mxu0 %v1365
        %v1367 = vand.u32 %v520, 4294901760
        %1368 = vmatpush1.msra.mxu0 %v1367
        %v1369 = vand.u32 %v523, 4294901760
        %1370 = vmatprep.subr.mxu0 %v1369
        %v1371 = vand.u32 %v522, 4294901760
        %1372 = vmatpush1.msra.mxu0 %v1371
        %v1373 = vand.u32 %v525, 4294901760
        %1374 = vmatprep.subr.mxu0 %v1373
        %v1375 = vand.u32 %v524, 4294901760
        %1376 = vmatpush1.msra.mxu0 %v1375
        %v1377 = vand.u32 %v527, 4294901760
        %1378 = vmatprep.subr.mxu0 %v1377
        %v1379 = vand.u32 %v526, 4294901760
        %1380 = vmatpush1.msra.mxu0 %v1379
        %v1381 = vand.u32 %v529, 4294901760
        %1382 = vmatprep.subr.mxu0 %v1381
        %v1383 = vand.u32 %v528, 4294901760
        %1384 = vmatpush1.msra.mxu0 %v1383
        %v1385 = vand.u32 %v531, 4294901760
        %1386 = vmatprep.subr.mxu0 %v1385
        %v1387 = vand.u32 %v530, 4294901760
        %1388 = vmatpush1.msra.mxu0 %v1387
        %1389 = vmatprep.subr.mxu0 0.0
        %1390 = vmatpush1.msra.mxu0 0.0
        %1391 = vmatprep.subr.mxu0 0.0
        %1392 = vmatpush1.msra.mxu0 0.0
        %1393 = vmatprep.subr.mxu0 0.0
        %1394 = vmatpush1.msra.mxu0 0.0
        %1395 = vmatprep.subr.mxu0 0.0
        %1396 = vmatpush1.msra.mxu0 0.0
        %1397 = vmatprep.subr.mxu0 0.0
        %1398 = vmatpush1.msra.mxu0 0.0
        %1399 = vmatprep.subr.mxu0 0.0
        %1400 = vmatpush1.msra.mxu0 0.0
        %1401 = vmatprep.subr.mxu0 0.0
        %1402 = vmatpush1.msra.mxu0 0.0
        %1403 = vmatprep.subr.mxu0 0.0
        %1404 = vmatpush1.msra.mxu0 0.0
        %1405 = vmatprep.subr.mxu0 0.0
        %1406 = vmatpush1.msra.mxu0 0.0
        %1407 = vmatprep.subr.mxu0 0.0
        %1408 = vmatpush1.msra.mxu0 0.0
        %1409 = vmatprep.subr.mxu0 0.0
        %1410 = vmatpush1.msra.mxu0 0.0
        %1411 = vmatprep.subr.mxu0 0.0
        %1412 = vmatpush1.msra.mxu0 0.0
        %1413 = vmatprep.subr.mxu0 0.0
        %1414 = vmatpush1.msra.mxu0 0.0
        %1415 = vmatprep.subr.mxu0 0.0
        %1416 = vmatpush1.msra.mxu0 0.0
        %1417 = vmatprep.subr.mxu0 0.0
        %1418 = vmatpush1.msra.mxu0 0.0
        %1419 = vmatprep.subr.mxu0 0.0
        %1420 = vmatpush1.msra.mxu0 0.0
        %1421 = vmatprep.mubr.f32.mxu0 0.0
        %v1422 = vand.u32 %v498, 4294901760
        %1423 = vmatmul.mubr.f32.gmra.mrb[0].mxu0 %v1422
        %v1424 = vpop.f32.mrb[0].mxu0
        %v1425 = vadd.f32 %v1314, %v1424
        %v1426 = vpop.f32.mrb[0].mxu0
        %v1427 = vadd.f32 %v1316, %v1426
        %1428 = vmatprep.mubr.f32.mxu0 0.0
        %v1429 = vand.u32 %v499, 4294901760
        %1430 = vmatmul.mubr.f32.gmra.mrb[0].mxu0 %v1429
        %v1431 = vpop.f32.mrb[0].mxu0
        %v1432 = vadd.f32 %v1321, %v1431
        %v1433 = vpop.f32.mrb[0].mxu0
        %v1434 = vadd.f32 %v1323, %v1433
        %1435 = vdwg.mxu0
        %v1436 = vmul.f32 %v1425, %v1425
        %v1437 = vmul.f32 %v1432, %v1432
        %v1438 = vmul.f32 %v1427, %v1427
        %v1439 = vmul.f32 %v1434, %v1434
        %v1440 = vadd.f32 %v1436, %v1438
        %v1441 = vadd.f32 %v1437, %v1439
        %v1442 = vmax.f32 %v1440, 1e-07
        %v1443 = vmax.f32 %v1441, 1e-07
        %v1444 = vlog2.pop %v1442
        %v1445 = vmul.f32 %v1444, 0.6931472
        %v1446 = vlog2.pop %v1443
        %v1447 = vmul.f32 %v1446, 0.6931472
        %v1448 = vld [vmem:[#allocation11] sm:$0xff]
        %v1449 = vld [vmem:[#allocation11 + $0x8] sm:$0xff]
        %v1450 = vld [vmem:[#allocation11 + $0x10] sm:$0xff]
        %v1451 = vld [vmem:[#allocation11 + $0x18] sm:$0xff]
        %v1452 = vld [vmem:[#allocation11 + $0x20] sm:$0xff]
        %v1453 = vld [vmem:[#allocation11 + $0x28] sm:$0xff]
        %v1454 = vld [vmem:[#allocation11 + $0x30] sm:$0xff]
        %v1455 = vld [vmem:[#allocation11 + $0x38] sm:$0xff]
        %v1456 = vld [vmem:[#allocation11 + $0x40] sm:$0xff]
        %v1457 = vld [vmem:[#allocation11 + $0x48] sm:$0xff]
        %v1458 = vld [vmem:[#allocation11 + $0x50] sm:$0xff]
        %v1459 = vld [vmem:[#allocation11 + $0x58] sm:$0xff]
        %v1460 = vld [vmem:[#allocation11 + $0x60] sm:$0xff]
        %v1461 = vld [vmem:[#allocation11 + $0x68] sm:$0xff]
        %v1462 = vld [vmem:[#allocation11 + $0x70] sm:$0xff]
        %v1463 = vld [vmem:[#allocation11 + $0x78] sm:$0xff]
        %1464 = vmatprep.subr.mxu0 0.0
        %1465 = vmatpush1.msra.mxu0 %v1448
        %1466 = vmatprep.subr.mxu0 0.0
        %1467 = vmatpush1.msra.mxu0 %v1449
        %1468 = vmatprep.subr.mxu0 0.0
        %1469 = vmatpush1.msra.mxu0 %v1450
        %1470 = vmatprep.subr.mxu0 0.0
        %1471 = vmatpush1.msra.mxu0 %v1451
        %1472 = vmatprep.subr.mxu0 0.0
        %1473 = vmatpush1.msra.mxu0 %v1452
        %1474 = vmatprep.subr.mxu0 0.0
        %1475 = vmatpush1.msra.mxu0 %v1453
        %1476 = vmatprep.subr.mxu0 0.0
        %1477 = vmatpush1.msra.mxu0 %v1454
        %1478 = vmatprep.subr.mxu0 0.0
        %1479 = vmatpush1.msra.mxu0 %v1455
        %1480 = vmatprep.subr.mxu0 0.0
        %1481 = vmatpush1.msra.mxu0 %v1456
        %1482 = vmatprep.subr.mxu0 0.0
        %1483 = vmatpush1.msra.mxu0 %v1457
        %1484 = vmatprep.subr.mxu0 0.0
        %1485 = vmatpush1.msra.mxu0 %v1458
        %1486 = vmatprep.subr.mxu0 0.0
        %1487 = vmatpush1.msra.mxu0 %v1459
        %1488 = vmatprep.subr.mxu0 0.0
        %1489 = vmatpush1.msra.mxu0 %v1460
        %1490 = vmatprep.subr.mxu0 0.0
        %1491 = vmatpush1.msra.mxu0 %v1461
        %1492 = vmatprep.subr.mxu0 0.0
        %1493 = vmatpush1.msra.mxu0 %v1462
        %1494 = vmatprep.subr.mxu0 0.0
        %1495 = vmatpush1.msra.mxu0 %v1463
        %1496 = vmatprep.subr.mxu0 0.0
        %1497 = vmatpush1.msra.mxu0 0.0
        %1498 = vmatprep.subr.mxu0 0.0
        %1499 = vmatpush1.msra.mxu0 0.0
        %1500 = vmatprep.subr.mxu0 0.0
        %1501 = vmatpush1.msra.mxu0 0.0
        %1502 = vmatprep.subr.mxu0 0.0
        %1503 = vmatpush1.msra.mxu0 0.0
        %1504 = vmatprep.subr.mxu0 0.0
        %1505 = vmatpush1.msra.mxu0 0.0
        %1506 = vmatprep.subr.mxu0 0.0
        %1507 = vmatpush1.msra.mxu0 0.0
        %1508 = vmatprep.subr.mxu0 0.0
        %1509 = vmatpush1.msra.mxu0 0.0
        %1510 = vmatprep.subr.mxu0 0.0
        %1511 = vmatpush1.msra.mxu0 0.0
        %1512 = vmatprep.subr.mxu0 0.0
        %1513 = vmatpush1.msra.mxu0 0.0
        %1514 = vmatprep.subr.mxu0 0.0
        %1515 = vmatpush1.msra.mxu0 0.0
        %1516 = vmatprep.subr.mxu0 0.0
        %1517 = vmatpush1.msra.mxu0 0.0
        %1518 = vmatprep.subr.mxu0 0.0
        %1519 = vmatpush1.msra.mxu0 0.0
        %1520 = vmatprep.subr.mxu0 0.0
        %1521 = vmatpush1.msra.mxu0 0.0
        %1522 = vmatprep.subr.mxu0 0.0
        %1523 = vmatpush1.msra.mxu0 0.0
        %1524 = vmatprep.subr.mxu0 0.0
        %1525 = vmatpush1.msra.mxu0 0.0
        %1526 = vmatprep.subr.mxu0 0.0
        %1527 = vmatpush1.msra.mxu0 0.0
        %1528 = vmatprep.mubr.f32.mxu0 0.0
        %1529 = vmatmul.mubr.f32.gmra.mrb[0].mxu0 %v1445
        %v1530 = vpop.f32.mrb[0].mxu0
        %v1531 = vadd.f32 0.0, %v1530
        %v1532 = vpop.f32.mrb[0].mxu0
        %1533 = vmatprep.mubr.f32.mxu0 0.0
        %1534 = vmatmul.mubr.f32.gmra.mrb[0].mxu0 %v1447
        %v1535 = vpop.f32.mrb[0].mxu0
        %v1536 = vadd.f32 0.0, %v1535
        %v1537 = vpop.f32.mrb[0].mxu0
        %1538 = vdwg.mxu0
        %v1539 = vld [vmem:[%s414] sm:$0xff]
        %v1540 = vld [vmem:[%s414 + $0x8] sm:$0xff]
        %v1541 = vmul.f32 %v1531, %v1539
        %v1542 = vmul.f32 %v1536, %v1540
        %v1543 = vld [vmem:[%s423] sm:$0xff]
        %v1544 = vld [vmem:[%s423 + $0x8] sm:$0xff]
        %v1545 = vmul.f32 %v1541, %v1543
        %v1546 = vmul.f32 %v1542, %v1544
        %v1547 = vld [vmem:[#allocation13] sm:$0xff]
        %v1548 = vld [vmem:[#allocation13 + $0x8] sm:$0xff]
        %v1549 = vld [vmem:[#allocation13 + $0x10] sm:$0xff]
        %v1550 = vld [vmem:[#allocation13 + $0x18] sm:$0xff]
        %v1551 = vld [vmem:[#allocation13 + $0x20] sm:$0xff]
        %v1552 = vld [vmem:[#allocation13 + $0x28] sm:$0xff]
        %v1553 = vld [vmem:[#allocation13 + $0x30] sm:$0xff]
        %v1554 = vld [vmem:[#allocation13 + $0x38] sm:$0xff]
        %v1555 = vld [vmem:[#allocation13 + $0x40] sm:$0xff]
        %v1556 = vld [vmem:[#allocation13 + $0x48] sm:$0xff]
        %v1557 = vld [vmem:[#allocation13 + $0x50] sm:$0xff]
        %v1558 = vld [vmem:[#allocation13 + $0x58] sm:$0xff]
        %v1559 = vld [vmem:[#allocation13 + $0x60] sm:$0xff]
        %v1560 = vld [vmem:[#allocation13 + $0x68] sm:$0xff]
        %v1561 = vld [vmem:[#allocation13 + $0x70] sm:$0xff]
        %v1562 = vld [vmem:[#allocation13 + $0x78] sm:$0xff]
        %1563 = vmatprep.subr.mxu0 0.0
        %1564 = vmatpush1.msra.mxu0 %v1547
        %1565 = vmatprep.subr.mxu0 0.0
        %1566 = vmatpush1.msra.mxu0 %v1548
        %1567 = vmatprep.subr.mxu0 0.0
        %1568 = vmatpush1.msra.mxu0 %v1549
        %1569 = vmatprep.subr.mxu0 0.0
        %1570 = vmatpush1.msra.mxu0 %v1550
        %1571 = vmatprep.subr.mxu0 0.0
        %1572 = vmatpush1.msra.mxu0 %v1551
        %1573 = vmatprep.subr.mxu0 0.0
        %1574 = vmatpush1.msra.mxu0 %v1552
        %1575 = vmatprep.subr.mxu0 0.0
        %1576 = vmatpush1.msra.mxu0 %v1553
        %1577 = vmatprep.subr.mxu0 0.0
        %1578 = vmatpush1.msra.mxu0 %v1554
        %1579 = vmatprep.subr.mxu0 0.0
        %1580 = vmatpush1.msra.mxu0 %v1555
        %1581 = vmatprep.subr.mxu0 0.0
        %1582 = vmatpush1.msra.mxu0 %v1556
        %1583 = vmatprep.subr.mxu0 0.0
        %1584 = vmatpush1.msra.mxu0 %v1557
        %1585 = vmatprep.subr.mxu0 0.0
        %1586 = vmatpush1.msra.mxu0 %v1558
        %1587 = vmatprep.subr.mxu0 0.0
        %1588 = vmatpush1.msra.mxu0 %v1559
        %1589 = vmatprep.subr.mxu0 0.0
        %1590 = vmatpush1.msra.mxu0 %v1560
        %1591 = vmatprep.subr.mxu0 0.0
        %1592 = vmatpush1.msra.mxu0 %v1561
        %1593 = vmatprep.subr.mxu0 0.0
        %1594 = vmatpush1.msra.mxu0 %v1562
        %1595 = vmatprep.subr.mxu0 0.0
        %1596 = vmatpush1.msra.mxu0 0.0
        %1597 = vmatprep.subr.mxu0 0.0
        %1598 = vmatpush1.msra.mxu0 0.0
        %1599 = vmatprep.subr.mxu0 0.0
        %1600 = vmatpush1.msra.mxu0 0.0
        %1601 = vmatprep.subr.mxu0 0.0
        %1602 = vmatpush1.msra.mxu0 0.0
        %1603 = vmatprep.subr.mxu0 0.0
        %1604 = vmatpush1.msra.mxu0 0.0
        %1605 = vmatprep.subr.mxu0 0.0
        %1606 = vmatpush1.msra.mxu0 0.0
        %1607 = vmatprep.subr.mxu0 0.0
        %1608 = vmatpush1.msra.mxu0 0.0
        %1609 = vmatprep.subr.mxu0 0.0
        %1610 = vmatpush1.msra.mxu0 0.0
        %1611 = vmatprep.subr.mxu0 0.0
        %1612 = vmatpush1.msra.mxu0 0.0
        %1613 = vmatprep.subr.mxu0 0.0
        %1614 = vmatpush1.msra.mxu0 0.0
        %1615 = vmatprep.subr.mxu0 0.0
        %1616 = vmatpush1.msra.mxu0 0.0
        %1617 = vmatprep.subr.mxu0 0.0
        %1618 = vmatpush1.msra.mxu0 0.0
        %1619 = vmatprep.subr.mxu0 0.0
        %1620 = vmatpush1.msra.mxu0 0.0
        %1621 = vmatprep.subr.mxu0 0.0
        %1622 = vmatpush1.msra.mxu0 0.0
        %1623 = vmatprep.subr.mxu0 0.0
        %1624 = vmatpush1.msra.mxu0 0.0
        %1625 = vmatprep.subr.mxu0 0.0
        %1626 = vmatpush1.msra.mxu0 0.0
        %1627 = vmatprep.mubr.f32.mxu0 0.0
        %1628 = vmatmul.mubr.f32.gmra.mrb[0].mxu0 %v1545
        %v1629 = vpop.f32.mrb[0].mxu0
        %v1630 = vadd.f32 0.0, %v1629
        %v1631 = vpop.f32.mrb[0].mxu0
        %1632 = vmatprep.mubr.f32.mxu0 0.0
        %1633 = vmatmul.mubr.f32.gmra.mrb[0].mxu0 %v1546
        %v1634 = vpop.f32.mrb[0].mxu0
        %v1635 = vadd.f32 0.0, %v1634
        %v1636 = vpop.f32.mrb[0].mxu0
        %1637 = vdwg.mxu0
        %v1638 = vmul.f32 %v1630, %v1630
        %v1639 = vmul.f32 %v1635, %v1635
        %v1640 = vld [vmem:[%s480] sm:$0xff]
        %v1641 = vadd.f32 %v1638, %v1639
        %v1642 = vadd.f32 %v1640, %v1641
        %1643 = vst [vmem:[%s480] sm:$0xff] %v1642
        %s1644 = sand.u32 %s226, 1
        %s1645 = scalar_lea.sflag [#allocation4], %s1644
        %s1646 = sand.u32 %s226, 1
        %s1647 = smul.addr %s1646, 8
        %s1648 = scalar_lea.vmem [#allocation14], %s1647
        // Predicated region
        $region81: #{tpu_custom_call.1} parent=47 // pred_check
          %p1649 = pneg %p236
        $region82: #{tpu_custom_call.1} parent=47 // pred_check_branch
          %1651 = sbr.rel (%p1649) target = $region84
        $region83: #{tpu_custom_call.1} parent=47 // pred_region
          %s1653 = ssub.s32 128, 128
          %1654 = vsyncadd %s1645, %s1653
          %s1655 = smul.addr %s35, 128
          %s1656 = scalar_lea.hbm %s7, %s1655
          %s1658 = sshll.u32 %s1648, 4
          %s1659 = int_to_ptr.vmem [resolvable:$true] %s1658
          %1661 = dma.vmem_to_hbm [thread:$0]  %s1659, 128, %s1656, %s1645
        $region84: #{tpu_custom_call.1} parent=47 // pred_fallthru
          _
      $region48: #{tpu_custom_call.1} parent=5 // pred_fallthru
        _
      %p1662 = scmp.le.s32.totalorder 2, %s26
      // Predicated region
      $region85: #{tpu_custom_call.1} parent=5 // pred_check
        %p1663 = pneg %p1662
      $region86: #{tpu_custom_call.1} parent=5 // pred_check_branch
        %1665 = sbr.rel (%p1663) target = $region88
      $region87: #{tpu_custom_call.1} parent=5 // pred_region
        %s1666 = ssub.s32 %s26, 2
        // Predicated region
        $region89: #{tpu_custom_call.1} parent=87 // pred_check
          %p1667 = pneg %p242
        $region90: #{tpu_custom_call.1} parent=87 // pred_check_branch
          %1669 = sbr.rel (%p1667) target = $region92
        $region91: #{tpu_custom_call.1} parent=87 // pred_region
          %s1670 = sand.u32 %s227, 1
          %s1671 = scalar_lea.sflag [#allocation4], %s1670
          %s1672 = sand.u32 %s227, 1
          %s1673 = smul.addr %s1672, 8
          %s1674 = scalar_lea.vmem [#allocation14], %s1673
          %1675 = dma.done %s1671, 128
        $region92: #{tpu_custom_call.1} parent=87 // pred_fallthru
          _
      $region88: #{tpu_custom_call.1} parent=5 // pred_fallthru
        _
    $region6: #{tpu_custom_call.1} parent=1 // loop_footer
      %s30 = sadd.s32 1, %s26
    $region7: #{tpu_custom_call.1} parent=1 // loop_footer_branch
      %25 = sbr.rel target = $region3
    $region8: #{tpu_custom_call.1} parent=1 // loop_exit
      _
    %1676 = vsyncpa [#allocation3], 1
    %s1677 = scalar_lea.sflag [#allocation3], 1
    %1678 = vsyncpa %s1677, 1
    %1679 = vsyncpa [#allocation6], 1
    %s1680 = scalar_lea.sflag [#allocation6], 1
    %1681 = vsyncpa %s1680, 1
    %1682 = vsyncpa [#allocation9], 1
    %s1683 = scalar_lea.sflag [#allocation9], 1
    %1684 = vsyncpa %s1683, 1
    %1685 = vsyncpa [#allocation12], 1
    %1686 = vsyncpa [#allocation4], 1
    %s1687 = scalar_lea.sflag [#allocation4], 1
    %1688 = vsyncpa %s1687, 1

</llo_original>
